<compile_context>
chip_gen: v7x
topology: tpu7x:2x2x1
jax: 0.10.0
libtpu: 0.0.40
codegen_flags: <defaults>
</compile_context>

<pallas_src>
import functools

import jax
import jax.numpy as jnp
from jax.experimental import pallas as pl
from jax.experimental.pallas import tpu as pltpu


def _mha_kernel(x_ref, wq_ref, bq_ref, wk_ref, bk_ref, wv_ref, bv_ref,
                wo_ref, bo_ref, out_ref, attn_ref, *, num_heads, d_k):
    # x_ref: (1, S, D) in x.dtype; w*_ref: (D, D) bf16, already transposed so
    # y = x @ w + b; b*_ref: (1, D) f32.
    S = x_ref.shape[1]
    D = x_ref.shape[2]

    # bf16 operands for the MXU; accumulate in f32.
    x_bf = x_ref[0].astype(jnp.bfloat16)                   # (S, D)

    q = jnp.dot(x_bf, wq_ref[...], preferred_element_type=jnp.float32) + bq_ref[...]
    k = jnp.dot(x_bf, wk_ref[...], preferred_element_type=jnp.float32) + bk_ref[...]
    v = jnp.dot(x_bf, wv_ref[...], preferred_element_type=jnp.float32) + bv_ref[...]

    # Fold the 1/sqrt(d_k) scale into q: S*D multiplies instead of H*S*S.
    q = q * (1.0 / jnp.sqrt(jnp.float32(d_k)))

    # (S, D) -> (H, S, d_k): head-batched layout, one dot_general for all heads.
    def to_heads(t):
        return jnp.transpose(t.reshape(S, num_heads, d_k), (1, 0, 2))

    qh = to_heads(q).astype(jnp.bfloat16)                  # (H, S, d_k)
    kh = to_heads(k).astype(jnp.bfloat16)
    vh = to_heads(v).astype(jnp.bfloat16)

    # Scores for every head at once: (H, S, S), f32 accumulation.
    scores = jnp.einsum("hqd,hkd->hqk", qh, kh,
                        preferred_element_type=jnp.float32)

    # Numerically stable softmax in f32; EUP approx reciprocal for the
    # normalization (the divide would otherwise burn VALU slots on (H,S,S)).
    scores = scores - jnp.max(scores, axis=-1, keepdims=True)
    e = jnp.exp(scores)
    attn = e * pl.reciprocal(jnp.sum(e, axis=-1, keepdims=True), approx=True)

    # Single slab store of all heads' attention weights.
    attn_ref[0] = attn.astype(attn_ref.dtype)

    # Context for all heads: (H, S, d_k) -> (S, D) head-concat (transpose back).
    ctx = jnp.einsum("hqk,hkd->hqd", attn.astype(jnp.bfloat16), vh,
                     preferred_element_type=jnp.float32)
    ctx = jnp.transpose(ctx, (1, 0, 2)).reshape(S, D).astype(jnp.bfloat16)

    out = jnp.dot(ctx, wo_ref[...], preferred_element_type=jnp.float32) + bo_ref[...]
    out_ref[0] = out.astype(out_ref.dtype)


def self_attention_pallas(x, params, num_heads):
    """x: (B, S, D).  params: (D,D) weights in PyTorch (out,in) layout, (D,) biases."""
    B, S, D = x.shape
    d_k = D // num_heads

    # Glue: pre-transpose weights so the kernel does x @ W^T via plain matmul,
    # and pre-cast them to bf16 (native MXU rate, half the weight DMA bytes).
    # Biases stay f32 and are added to the f32 accumulators.
    wq_t = params["wq"].T.astype(jnp.bfloat16)
    wk_t = params["wk"].T.astype(jnp.bfloat16)
    wv_t = params["wv"].T.astype(jnp.bfloat16)
    wo_t = params["wo"].T.astype(jnp.bfloat16)
    bq = params["bq"].reshape(1, D).astype(jnp.float32)
    bk = params["bk"].reshape(1, D).astype(jnp.float32)
    bv = params["bv"].reshape(1, D).astype(jnp.float32)
    bo = params["bo"].reshape(1, D).astype(jnp.float32)

    kernel = functools.partial(_mha_kernel, num_heads=num_heads, d_k=d_k)

    full2d = lambda b: (0, 0)  # grid-invariant weight/bias blocks

    # Scoped-VMEM budget sized from the actual per-grid-step footprint
    # (double-buffered I/O blocks + weights + in-kernel intermediates), with
    # margin; clamped so it is always legal on v5e/v6e/v7x.
    attn_itemsize = jnp.dtype(x.dtype).itemsize
    est = (
        2 * S * D * 4                        # x block (double-buffered, f32)
        + 2 * S * D * 4                      # output block
        + 2 * num_heads * S * S * attn_itemsize  # attn block
        + 2 * 4 * D * D * 2                  # 4 bf16 weight matrices
        + 2 * 4 * D * 4                      # biases
        + 8 * S * D * 4                      # q/k/v/ctx (f32 + bf16 copies)
        + 4 * num_heads * S * S * 4          # scores / exp / attn intermediates
    )
    vmem_limit = int(max(32 * 1024 * 1024, min(2 * est, 64 * 1024 * 1024)))

    return pl.pallas_call(
        kernel,
        out_shape=(
            jax.ShapeDtypeStruct((B, S, D), x.dtype),                 # output
            jax.ShapeDtypeStruct((B, num_heads, S, S), x.dtype),      # attention_weights
        ),
        grid_spec=pltpu.PrefetchScalarGridSpec(
            num_scalar_prefetch=0,
            grid=(B,),
            in_specs=[
                pl.BlockSpec((1, S, D), lambda b: (b, 0, 0)),  # x: one batch row / step
                # Weights/biases: constant index_map -> same VMEM block reused
                # across the whole grid (no re-DMA). For large D these should
                # be single-buffered (pl.Buffered(1)) to halve their footprint.
                pl.BlockSpec((D, D), full2d), pl.BlockSpec((1, D), full2d),
                pl.BlockSpec((D, D), full2d), pl.BlockSpec((1, D), full2d),
                pl.BlockSpec((D, D), full2d), pl.BlockSpec((1, D), full2d),
                pl.BlockSpec((D, D), full2d), pl.BlockSpec((1, D), full2d),
            ],
            out_specs=[
                pl.BlockSpec((1, S, D), lambda b: (b, 0, 0)),
                pl.BlockSpec((1, num_heads, S, S), lambda b: (b, 0, 0, 0)),
            ],
        ),
        compiler_params=pltpu.CompilerParams(
            dimension_semantics=("parallel",),
            vmem_limit_bytes=vmem_limit,
        ),
    )(x, wq_t, bq, wk_t, bk, wv_t, bv, wo_t, bo)


def self_attention_ref(x, params, num_heads):
    """Pure-JAX f32 reference matching the PyTorch forward (mask=None)."""
    B, S, D = x.shape
    d_k = D // num_heads
    lin = lambda a, w, b: a @ w.T + b
    q = lin(x, params["wq"], params["bq"]).reshape(B, S, num_heads, d_k).transpose(0, 2, 1, 3)
    k = lin(x, params["wk"], params["bk"]).reshape(B, S, num_heads, d_k).transpose(0, 2, 1, 3)
    v = lin(x, params["wv"], params["bv"]).reshape(B, S, num_heads, d_k).transpose(0, 2, 1, 3)
    scores = jnp.einsum("bhqd,bhkd->bhqk", q, k) / jnp.sqrt(jnp.float32(d_k))
    attn = jax.nn.softmax(scores, axis=-1)
    ctx = jnp.einsum("bhqk,bhkd->bhqd", attn, v).transpose(0, 2, 1, 3).reshape(B, S, D)
    out = lin(ctx, params["wo"], params["bo"])
    return out, attn


def init_params(key, d_model):
    # Deterministic init mimicking nn.Linear default: U(-1/sqrt(in), 1/sqrt(in)).
    bound = 1.0 / jnp.sqrt(jnp.float32(d_model))
    keys = jax.random.split(key, 8)
    u = lambda k, shape: jax.random.uniform(k, shape, jnp.float32, -bound, bound)
    return {
        "wq": u(keys[0], (d_model, d_model)), "bq": u(keys[1], (d_model,)),
        "wk": u(keys[2], (d_model, d_model)), "bk": u(keys[3], (d_model,)),
        "wv": u(keys[4], (d_model, d_model)), "bv": u(keys[5], (d_model,)),
        "wo": u(keys[6], (d_model, d_model)), "bo": u(keys[7], (d_model,)),
    }


if __name__ == "__main__":
    # TODO(synk): optional attention `mask` argument not implemented (mask=None path only).
    B, S, D, H = 2, 8, 32, 4

    key = jax.random.PRNGKey(0)
    kx, kp = jax.random.split(key)
    x = jax.random.normal(kx, (B, S, D), dtype=jnp.float32)
    params = init_params(kp, D)

    out, attn = self_attention_pallas(x, params, num_heads=H)
    out, attn = jax.block_until_ready((out, attn))

    # Reference is pure f32; the kernel feeds bf16 operands to the MXU
    # (f32 accumulation), so tolerances are loosened accordingly.
    out_ref, attn_ref = self_attention_ref(x, params, num_heads=H)
    assert out.shape == out_ref.shape and attn.shape == attn_ref.shape
    assert jnp.allclose(out, out_ref, atol=3e-2, rtol=3e-2)
    assert jnp.allclose(attn, attn_ref, atol=3e-2, rtol=3e-2)

    print("KERNEL_OK")
</pallas_src>

<mosaic_0001>
module attributes {stable_mosaic.version = 11 : i64} {
  func.func @_mha_kernel(%arg0: i32, %arg1: memref<1x8x32xf32, #tpu.memory_space<vmem>>, %arg2: memref<32x32xbf16, #tpu.memory_space<vmem>>, %arg3: memref<1x32xf32, #tpu.memory_space<vmem>>, %arg4: memref<32x32xbf16, #tpu.memory_space<vmem>>, %arg5: memref<1x32xf32, #tpu.memory_space<vmem>>, %arg6: memref<32x32xbf16, #tpu.memory_space<vmem>>, %arg7: memref<1x32xf32, #tpu.memory_space<vmem>>, %arg8: memref<32x32xbf16, #tpu.memory_space<vmem>>, %arg9: memref<1x32xf32, #tpu.memory_space<vmem>>, %arg10: memref<1x8x32xf32, #tpu.memory_space<vmem>>, %arg11: memref<1x4x8x8xf32, #tpu.memory_space<vmem>>) attributes {dimension_semantics = [#tpu.dimension_semantics<parallel>], iteration_bounds = array<i64: 2>, scalar_prefetch = 0 : i64, scratch_operands = 0 : i64, tpu.core_type = #tpu.core_type<tc>, window_params = [{transform_indices = @transform_0, window_bounds = array<i64: 1, 8, 32>}, {pipeline_mode = #tpu.pipeline_mode<synchronous>, transform_indices = @transform_1, window_bounds = array<i64: 32, 32>}, {pipeline_mode = #tpu.pipeline_mode<synchronous>, transform_indices = @transform_2, window_bounds = array<i64: 1, 32>}, {pipeline_mode = #tpu.pipeline_mode<synchronous>, transform_indices = @transform_3, window_bounds = array<i64: 32, 32>}, {pipeline_mode = #tpu.pipeline_mode<synchronous>, transform_indices = @transform_4, window_bounds = array<i64: 1, 32>}, {pipeline_mode = #tpu.pipeline_mode<synchronous>, transform_indices = @transform_5, window_bounds = array<i64: 32, 32>}, {pipeline_mode = #tpu.pipeline_mode<synchronous>, transform_indices = @transform_6, window_bounds = array<i64: 1, 32>}, {pipeline_mode = #tpu.pipeline_mode<synchronous>, transform_indices = @transform_7, window_bounds = array<i64: 32, 32>}, {pipeline_mode = #tpu.pipeline_mode<synchronous>, transform_indices = @transform_8, window_bounds = array<i64: 1, 32>}, {transform_indices = @transform_9, window_bounds = array<i64: 1, 8, 32>}, {transform_indices = @transform_10, window_bounds = array<i64: 1, 4, 8, 8>}]} {
    %c0 = arith.constant 0 : index
    %c0_0 = arith.constant 0 : index
    %c0_1 = arith.constant 0 : index
    %0 = vector.load %arg1[%c0, %c0_0, %c0_1] : memref<1x8x32xf32, #tpu.memory_space<vmem>>, vector<1x8x32xf32>
    %1 = vector.shape_cast %0 : vector<1x8x32xf32> to vector<8x32xf32>
    %2 = arith.truncf %1 : vector<8x32xf32> to vector<8x32xbf16>
    %c0_2 = arith.constant 0 : index
    %c0_3 = arith.constant 0 : index
    %3 = vector.load %arg2[%c0_2, %c0_3] : memref<32x32xbf16, #tpu.memory_space<vmem>>, vector<32x32xbf16>
    %cst = arith.constant dense<0.000000e+00> : vector<8x32xf32>
    %4 = tpu.matmul %2, %3, %cst {dimension_numbers = #tpu.dot_dimension_numbers<[1], [0], [0], [1], [0, 0, 1, 1], [], []>} : vector<8x32xbf16>, vector<32x32xbf16>, vector<8x32xf32> -> vector<8x32xf32>
    %c0_4 = arith.constant 0 : index
    %c0_5 = arith.constant 0 : index
    %5 = vector.load %arg3[%c0_4, %c0_5] : memref<1x32xf32, #tpu.memory_space<vmem>>, vector<1x32xf32>
    %6 = vector.broadcast %5 : vector<1x32xf32> to vector<8x32xf32>
    %7 = arith.addf %4, %6 : vector<8x32xf32>
    %c0_6 = arith.constant 0 : index
    %c0_7 = arith.constant 0 : index
    %8 = vector.load %arg4[%c0_6, %c0_7] : memref<32x32xbf16, #tpu.memory_space<vmem>>, vector<32x32xbf16>
    %cst_8 = arith.constant dense<0.000000e+00> : vector<8x32xf32>
    %9 = tpu.matmul %2, %8, %cst_8 {dimension_numbers = #tpu.dot_dimension_numbers<[1], [0], [0], [1], [0, 0, 1, 1], [], []>} : vector<8x32xbf16>, vector<32x32xbf16>, vector<8x32xf32> -> vector<8x32xf32>
    %c0_9 = arith.constant 0 : index
    %c0_10 = arith.constant 0 : index
    %10 = vector.load %arg5[%c0_9, %c0_10] : memref<1x32xf32, #tpu.memory_space<vmem>>, vector<1x32xf32>
    %11 = vector.broadcast %10 : vector<1x32xf32> to vector<8x32xf32>
    %12 = arith.addf %9, %11 : vector<8x32xf32>
    %c0_11 = arith.constant 0 : index
    %c0_12 = arith.constant 0 : index
    %13 = vector.load %arg6[%c0_11, %c0_12] : memref<32x32xbf16, #tpu.memory_space<vmem>>, vector<32x32xbf16>
    %cst_13 = arith.constant dense<0.000000e+00> : vector<8x32xf32>
    %14 = tpu.matmul %2, %13, %cst_13 {dimension_numbers = #tpu.dot_dimension_numbers<[1], [0], [0], [1], [0, 0, 1, 1], [], []>} : vector<8x32xbf16>, vector<32x32xbf16>, vector<8x32xf32> -> vector<8x32xf32>
    %c0_14 = arith.constant 0 : index
    %c0_15 = arith.constant 0 : index
    %15 = vector.load %arg7[%c0_14, %c0_15] : memref<1x32xf32, #tpu.memory_space<vmem>>, vector<1x32xf32>
    %16 = vector.broadcast %15 : vector<1x32xf32> to vector<8x32xf32>
    %17 = arith.addf %14, %16 : vector<8x32xf32>
    %cst_16 = arith.constant 8.000000e+00 : f32
    %18 = math.sqrt %cst_16 : f32
    %cst_17 = arith.constant 1.000000e+00 : f32
    %19 = arith.divf %cst_17, %18 : f32
    %20 = vector.broadcast %19 : f32 to vector<8x32xf32>
    %21 = arith.mulf %7, %20 : vector<8x32xf32>
    %22 = vector.shape_cast %21 : vector<8x32xf32> to vector<8x4x8xf32>
    %23 = tpu.transpose %22, [1, 0, 2] : vector<8x4x8xf32> -> vector<4x8x8xf32>
    %24 = arith.truncf %23 : vector<4x8x8xf32> to vector<4x8x8xbf16>
    %25 = vector.shape_cast %12 : vector<8x32xf32> to vector<8x4x8xf32>
    %26 = tpu.transpose %25, [1, 0, 2] : vector<8x4x8xf32> -> vector<4x8x8xf32>
    %27 = arith.truncf %26 : vector<4x8x8xf32> to vector<4x8x8xbf16>
    %28 = vector.shape_cast %17 : vector<8x32xf32> to vector<8x4x8xf32>
    %29 = tpu.transpose %28, [1, 0, 2] : vector<8x4x8xf32> -> vector<4x8x8xf32>
    %30 = arith.truncf %29 : vector<4x8x8xf32> to vector<4x8x8xbf16>
    "tpu.trace_start"() <{level = 10 : i32, message = "hqd,hkd->hqk"}> : () -> ()
    %cst_18 = arith.constant dense<0.000000e+00> : vector<4x8x8xf32>
    %31 = tpu.matmul %24, %27, %cst_18 {dimension_numbers = #tpu.dot_dimension_numbers<[2], [2], [1], [1], [0, 0, 0, 1, 1, 1], [0], [0]>} : vector<4x8x8xbf16>, vector<4x8x8xbf16>, vector<4x8x8xf32> -> vector<4x8x8xf32>
    "tpu.trace_stop"() : () -> ()
    %cst_19 = arith.constant dense<0xFF800000> : vector<4x8xf32>
    %32 = vector.multi_reduction <maximumf>, %31, %cst_19 [2] : vector<4x8x8xf32> to vector<4x8xf32>
    %33 = vector.shape_cast %32 : vector<4x8xf32> to vector<4x8x1xf32>
    %34 = vector.broadcast %33 : vector<4x8x1xf32> to vector<4x8x8xf32>
    %35 = arith.subf %31, %34 : vector<4x8x8xf32>
    %36 = math.exp %35 : vector<4x8x8xf32>
    %cst_20 = arith.constant dense<0.000000e+00> : vector<4x8xf32>
    %37 = vector.multi_reduction <add>, %36, %cst_20 [2] : vector<4x8x8xf32> to vector<4x8xf32>
    %38 = vector.shape_cast %37 : vector<4x8xf32> to vector<4x8x1xf32>
    %39 = tpu.reciprocal %38 {approx = true} : vector<4x8x1xf32> -> vector<4x8x1xf32>
    %40 = vector.broadcast %39 : vector<4x8x1xf32> to vector<4x8x8xf32>
    %41 = arith.mulf %36, %40 : vector<4x8x8xf32>
    %c0_21 = arith.constant 0 : index
    %c0_22 = arith.constant 0 : index
    %c0_23 = arith.constant 0 : index
    %c0_24 = arith.constant 0 : index
    %42 = vector.load %arg11[%c0_21, %c0_22, %c0_23, %c0_24] : memref<1x4x8x8xf32, #tpu.memory_space<vmem>>, vector<1x4x8x8xf32>
    %43 = vector.shape_cast %42 : vector<1x4x8x8xf32> to vector<4x8x8xf32>
    %44 = vector.shape_cast %41 : vector<4x8x8xf32> to vector<1x4x8x8xf32>
    tpu.vector_store %arg11[%c0_21, %c0_22, %c0_23, %c0_24], %44 {strides = array<i32>} : memref<1x4x8x8xf32, #tpu.memory_space<vmem>>, vector<1x4x8x8xf32>,
    %45 = arith.truncf %41 : vector<4x8x8xf32> to vector<4x8x8xbf16>
    "tpu.trace_start"() <{level = 10 : i32, message = "hqk,hkd->hqd"}> : () -> ()
    %cst_25 = arith.constant dense<0.000000e+00> : vector<4x8x8xf32>
    %46 = tpu.matmul %45, %30, %cst_25 {dimension_numbers = #tpu.dot_dimension_numbers<[2], [1], [1], [2], [0, 0, 0, 1, 1, 2], [0], [0]>} : vector<4x8x8xbf16>, vector<4x8x8xbf16>, vector<4x8x8xf32> -> vector<4x8x8xf32>
    "tpu.trace_stop"() : () -> ()
    %47 = tpu.transpose %46, [1, 0, 2] : vector<4x8x8xf32> -> vector<8x4x8xf32>
    %48 = vector.shape_cast %47 : vector<8x4x8xf32> to vector<8x32xf32>
    %49 = arith.truncf %48 : vector<8x32xf32> to vector<8x32xbf16>
    %c0_26 = arith.constant 0 : index
    %c0_27 = arith.constant 0 : index
    %50 = vector.load %arg8[%c0_26, %c0_27] : memref<32x32xbf16, #tpu.memory_space<vmem>>, vector<32x32xbf16>
    %cst_28 = arith.constant dense<0.000000e+00> : vector<8x32xf32>
    %51 = tpu.matmul %49, %50, %cst_28 {dimension_numbers = #tpu.dot_dimension_numbers<[1], [0], [0], [1], [0, 0, 1, 1], [], []>} : vector<8x32xbf16>, vector<32x32xbf16>, vector<8x32xf32> -> vector<8x32xf32>
    %c0_29 = arith.constant 0 : index
    %c0_30 = arith.constant 0 : index
    %52 = vector.load %arg9[%c0_29, %c0_30] : memref<1x32xf32, #tpu.memory_space<vmem>>, vector<1x32xf32>
    %53 = vector.broadcast %52 : vector<1x32xf32> to vector<8x32xf32>
    %54 = arith.addf %51, %53 : vector<8x32xf32>
    %c0_31 = arith.constant 0 : index
    %c0_32 = arith.constant 0 : index
    %c0_33 = arith.constant 0 : index
    %55 = vector.load %arg10[%c0_31, %c0_32, %c0_33] : memref<1x8x32xf32, #tpu.memory_space<vmem>>, vector<1x8x32xf32>
    %56 = vector.shape_cast %55 : vector<1x8x32xf32> to vector<8x32xf32>
    %57 = vector.shape_cast %54 : vector<8x32xf32> to vector<1x8x32xf32>
    tpu.vector_store %arg10[%c0_31, %c0_32, %c0_33], %57 {strides = array<i32>} : memref<1x8x32xf32, #tpu.memory_space<vmem>>, vector<1x8x32xf32>,
    return
  }
  func.func @transform_0(%arg0: i32) -> (i32, i32, i32) {
    %c0_i32 = arith.constant 0 : i32
    %c0_i32_0 = arith.constant 0 : i32
    %c0_i32_1 = arith.constant 0 : i32
    return %arg0, %c0_i32, %c0_i32_0 : i32, i32, i32
  }
  func.func @transform_1(%arg0: i32) -> (i32, i32) {
    %c0_i32 = arith.constant 0 : i32
    %c0_i32_0 = arith.constant 0 : i32
    %c0_i32_1 = arith.constant 0 : i32
    return %c0_i32, %c0_i32_0 : i32, i32
  }
  func.func @transform_2(%arg0: i32) -> (i32, i32) {
    %c0_i32 = arith.constant 0 : i32
    %c0_i32_0 = arith.constant 0 : i32
    %c0_i32_1 = arith.constant 0 : i32
    return %c0_i32, %c0_i32_0 : i32, i32
  }
  func.func @transform_3(%arg0: i32) -> (i32, i32) {
    %c0_i32 = arith.constant 0 : i32
    %c0_i32_0 = arith.constant 0 : i32
    %c0_i32_1 = arith.constant 0 : i32
    return %c0_i32, %c0_i32_0 : i32, i32
  }
  func.func @transform_4(%arg0: i32) -> (i32, i32) {
    %c0_i32 = arith.constant 0 : i32
    %c0_i32_0 = arith.constant 0 : i32
    %c0_i32_1 = arith.constant 0 : i32
    return %c0_i32, %c0_i32_0 : i32, i32
  }
  func.func @transform_5(%arg0: i32) -> (i32, i32) {
    %c0_i32 = arith.constant 0 : i32
    %c0_i32_0 = arith.constant 0 : i32
    %c0_i32_1 = arith.constant 0 : i32
    return %c0_i32, %c0_i32_0 : i32, i32
  }
  func.func @transform_6(%arg0: i32) -> (i32, i32) {
    %c0_i32 = arith.constant 0 : i32
    %c0_i32_0 = arith.constant 0 : i32
    %c0_i32_1 = arith.constant 0 : i32
    return %c0_i32, %c0_i32_0 : i32, i32
  }
  func.func @transform_7(%arg0: i32) -> (i32, i32) {
    %c0_i32 = arith.constant 0 : i32
    %c0_i32_0 = arith.constant 0 : i32
    %c0_i32_1 = arith.constant 0 : i32
    return %c0_i32, %c0_i32_0 : i32, i32
  }
  func.func @transform_8(%arg0: i32) -> (i32, i32) {
    %c0_i32 = arith.constant 0 : i32
    %c0_i32_0 = arith.constant 0 : i32
    %c0_i32_1 = arith.constant 0 : i32
    return %c0_i32, %c0_i32_0 : i32, i32
  }
  func.func @transform_9(%arg0: i32) -> (i32, i32, i32) {
    %c0_i32 = arith.constant 0 : i32
    %c0_i32_0 = arith.constant 0 : i32
    %c0_i32_1 = arith.constant 0 : i32
    return %arg0, %c0_i32, %c0_i32_0 : i32, i32, i32
  }
  func.func @transform_10(%arg0: i32) -> (i32, i32, i32, i32) {
    %c0_i32 = arith.constant 0 : i32
    %c0_i32_0 = arith.constant 0 : i32
    %c0_i32_1 = arith.constant 0 : i32
    %c0_i32_2 = arith.constant 0 : i32
    return %arg0, %c0_i32, %c0_i32_0, %c0_i32_1 : i32, i32, i32, i32
  }
}

</mosaic_0001>

<llo_original>
// kernel: tpu_custom_call.1
$region0: #{tpu_custom_call.1}
  #allocation0 [shape = 'u32[]', space=smem, size = 0x4, offset = 0x4, fixed_abs, tag = 'smem constant byte address 0x4 - core index']
  #allocation1 [shape = 'u32[144,128]{1,0:T(1,128)}', space=vmem, size = 0x12000, scoped, tag = 'internal scratch']
  %s0 = inlined_call_operand.hbm [shape: f32[2,8,32], index: 0, kind: input, shape index: {}]
  %s1 = inlined_call_operand.hbm [shape: bf16[32,32], index: 1, kind: input, shape index: {}]
  %s2 = inlined_call_operand.vmem [shape: f32[1,32], index: 2, kind: input, shape index: {}]
  %s3 = inlined_call_operand.hbm [shape: bf16[32,32], index: 3, kind: input, shape index: {}]
  %s4 = inlined_call_operand.vmem [shape: f32[1,32], index: 4, kind: input, shape index: {}]
  %s5 = inlined_call_operand.vmem [shape: bf16[32,32], index: 5, kind: input, shape index: {}]
  %s6 = inlined_call_operand.vmem [shape: f32[1,32], index: 6, kind: input, shape index: {}]
  %s7 = inlined_call_operand.hbm [shape: bf16[32,32], index: 7, kind: input, shape index: {}]
  %s8 = inlined_call_operand.vmem [shape: f32[1,32], index: 8, kind: input, shape index: {}]
  %s9 = inlined_call_operand.hbm [shape: f32[2,8,32], index: 9, kind: output, shape index: {0}]
  %s10 = inlined_call_operand.hbm [shape: f32[2,4,8,8], index: 10, kind: output, shape index: {1}]
  %11 = xla_tuple %s9, %s10
  %s12 = sld [smem:[#allocation0]]
  $region93: #{tpu_custom_call.1} parent=0
    _
  %s14 = ssub.s32 1, %s12
  %s15 = scalar_select 0, %s14, %s12
  $region1: #{tpu_custom_call.1} parent=0
    #allocation2 [shape = 'u8[8192]{0}', space=vmem, size = 0x2000, scoped, tag = 'input window, operand 0']
    #allocation3 [shape = 's32[2]{0}', space=sflag, size = 0x8, scoped, tag = 'scoped memory for tpu_custom_call.1']
    #allocation4 [shape = 's32[2]{0}', space=sflag, size = 0x8, scoped, tag = 'scoped memory for tpu_custom_call.1']
    #allocation5 [shape = 'u8[8192]{0}', space=vmem, size = 0x2000, scoped, tag = 'input window, operand 1, single buffered']
    #allocation6 [shape = 's32[1]{0}', space=sflag, size = 0x4, scoped, tag = 'scoped memory for tpu_custom_call.1']
    #allocation7 [shape = 'u8[8192]{0}', space=vmem, size = 0x2000, scoped, tag = 'input window, operand 3, single buffered']
    #allocation8 [shape = 'u8[8192]{0}', space=vmem, size = 0x2000, scoped, tag = 'input window, operand 7, single buffered']
    #allocation9 [shape = 's32[1]{0}', space=sflag, size = 0x4, scoped, tag = 'scoped memory for tpu_custom_call.1']
    #allocation10 [shape = 'u8[8192]{0}', space=vmem, size = 0x2000, scoped, tag = 'output window, operand 0']
    #allocation11 [shape = 'u8[32768]{0}', space=vmem, size = 0x8000, scoped, tag = 'output window, operand 1']
    #allocation12 [shape = 's32[2]{0}', space=sflag, size = 0x8, scoped, tag = 'scoped memory for tpu_custom_call.1']
    %16 = vsyncpa [#allocation3], 0
    %s17 = scalar_lea.sflag [#allocation3], 1
    %18 = vsyncpa %s17, 0
    %19 = vsyncpa [#allocation6], 0
    %20 = vsyncpa [#allocation9], 0
    %21 = vsyncpa [#allocation4], 0
    %s22 = scalar_lea.sflag [#allocation4], 1
    %23 = vsyncpa %s22, 0
    %24 = vsyncpa [#allocation12], 0
    %s25 = scalar_lea.sflag [#allocation12], 1
    %26 = vsyncpa %s25, 0
    loop: start=0, step=1, limit=4
    $region2: #{tpu_custom_call.1} parent=1 // loop_pre_header
      _
    $region3: #{tpu_custom_call.1} parent=1 // loop_header
      %s28 = sphi 0, %s32
      %p29 = scmp.ge.s32.totalorder %s28, 4
      %s38 = sphi 0, %s40
      %s41 = sphi 0, %s38
      %s42 = sphi 0, %s41
      %s58 = sphi 0, %s42
      %s62 = sphi 0, %s62
      %s64 = sphi 0, %s62
      %s65 = sphi 0, %s64
      %s79 = sphi 0, %s65
      %s83 = sphi 0, %s83
      %s85 = sphi 0, %s83
      %s86 = sphi 0, %s85
      %s100 = sphi 0, %s86
      %s104 = sphi 0, %s104
      %s106 = sphi 0, %s104
      %s107 = sphi 0, %s106
      %s121 = sphi 0, %s107
      %s125 = sphi 0, %s125
      %s127 = sphi 0, %s125
      %s128 = sphi 0, %s127
      %s142 = sphi 0, %s128
      %s146 = sphi 0, %s146
      %s148 = sphi 0, %s146
      %s149 = sphi 0, %s148
      %s163 = sphi 0, %s149
      %s167 = sphi 0, %s167
      %s169 = sphi 0, %s167
      %s170 = sphi 0, %s169
      %s184 = sphi 0, %s170
      %s188 = sphi 0, %s188
      %s190 = sphi 0, %s188
      %s191 = sphi 0, %s190
      %s205 = sphi 0, %s191
      %s209 = sphi 0, %s209
      %s211 = sphi 0, %s209
      %s212 = sphi 0, %s211
      %s226 = sphi 0, %s212
      %s232 = sphi 0, %s234
      %s235 = sphi 0, %s232
      %s236 = sphi 0, %s235
      %s252 = sphi 0, %s236
      %s258 = sphi 0, %s260
      %s261 = sphi 0, %s258
      %s262 = sphi 0, %s261
      %s278 = sphi 0, %s262
    $region4: #{tpu_custom_call.1} parent=1 // loop_header_branch
      %31 = sbr.rel (%p29) target = $region8
    $region5: #{tpu_custom_call.1} parent=1 // loop_body
      %s33 = ssub.s32 %s28, 1
      %s34 = ssub.s32 %s28, 2
      %s35 = sadd.s32 %s28, 1
      %s36 = ssub.s32 %s28, %s35
      %p37 = scmp.eq.s32.totalorder %s36, 0
      %s39 = sadd.s32 %s38, 1
      %s40 = scalar_select %p37, %s38, %s39
      %p43 = pneg %p37
      %p44 = scmp.eq.s32.totalorder %s28, 1
      %p45 = por %p43, %p44
      %p46 = scmp.ne.s32.totalorder %s38, %s41
      %p47 = scmp.eq.s32.totalorder %s28, 0
      %p48 = por %p46, %p47
      %p49 = scmp.ne.s32.totalorder %s38, %s41
      %p50 = scmp.eq.s32.totalorder %s33, 1
      %p51 = por %p49, %p50
      %p52 = scmp.ne.s32.totalorder %s41, %s42
      %p53 = scmp.eq.s32.totalorder %s33, 0
      %p54 = por %p52, %p53
      %p55 = scmp.ne.s32.totalorder %s41, %s42
      %p56 = scmp.eq.s32.totalorder %s34, 1
      %p57 = por %p55, %p56
      %p59 = scmp.ne.s32.totalorder %s42, %s58
      %p60 = scmp.eq.s32.totalorder %s34, 0
      %p61 = por %p59, %p60
      %s63 = sadd.s32 %s62, 1
      %p66 = scmp.eq.s32.totalorder %s28, 1
      %p67 = scmp.ne.s32.totalorder %s62, %s64
      %p68 = scmp.eq.s32.totalorder %s28, 0
      %p69 = por %p67, %p68
      %p70 = scmp.ne.s32.totalorder %s62, %s64
      %p71 = scmp.eq.s32.totalorder %s33, 1
      %p72 = por %p70, %p71
      %p73 = scmp.ne.s32.totalorder %s64, %s65
      %p74 = scmp.eq.s32.totalorder %s33, 0
      %p75 = por %p73, %p74
      %p76 = scmp.ne.s32.totalorder %s64, %s65
      %p77 = scmp.eq.s32.totalorder %s34, 1
      %p78 = por %p76, %p77
      %p80 = scmp.ne.s32.totalorder %s65, %s79
      %p81 = scmp.eq.s32.totalorder %s34, 0
      %p82 = por %p80, %p81
      %s84 = sadd.s32 %s83, 1
      %p87 = scmp.eq.s32.totalorder %s28, 1
      %p88 = scmp.ne.s32.totalorder %s83, %s85
      %p89 = scmp.eq.s32.totalorder %s28, 0
      %p90 = por %p88, %p89
      %p91 = scmp.ne.s32.totalorder %s83, %s85
      %p92 = scmp.eq.s32.totalorder %s33, 1
      %p93 = por %p91, %p92
      %p94 = scmp.ne.s32.totalorder %s85, %s86
      %p95 = scmp.eq.s32.totalorder %s33, 0
      %p96 = por %p94, %p95
      %p97 = scmp.ne.s32.totalorder %s85, %s86
      %p98 = scmp.eq.s32.totalorder %s34, 1
      %p99 = por %p97, %p98
      %p101 = scmp.ne.s32.totalorder %s86, %s100
      %p102 = scmp.eq.s32.totalorder %s34, 0
      %p103 = por %p101, %p102
      %s105 = sadd.s32 %s104, 1
      %p108 = scmp.eq.s32.totalorder %s28, 1
      %p109 = scmp.ne.s32.totalorder %s104, %s106
      %p110 = scmp.eq.s32.totalorder %s28, 0
      %p111 = por %p109, %p110
      %p112 = scmp.ne.s32.totalorder %s104, %s106
      %p113 = scmp.eq.s32.totalorder %s33, 1
      %p114 = por %p112, %p113
      %p115 = scmp.ne.s32.totalorder %s106, %s107
      %p116 = scmp.eq.s32.totalorder %s33, 0
      %p117 = por %p115, %p116
      %p118 = scmp.ne.s32.totalorder %s106, %s107
      %p119 = scmp.eq.s32.totalorder %s34, 1
      %p120 = por %p118, %p119
      %p122 = scmp.ne.s32.totalorder %s107, %s121
      %p123 = scmp.eq.s32.totalorder %s34, 0
      %p124 = por %p122, %p123
      %s126 = sadd.s32 %s125, 1
      %p129 = scmp.eq.s32.totalorder %s28, 1
      %p130 = scmp.ne.s32.totalorder %s125, %s127
      %p131 = scmp.eq.s32.totalorder %s28, 0
      %p132 = por %p130, %p131
      %p133 = scmp.ne.s32.totalorder %s125, %s127
      %p134 = scmp.eq.s32.totalorder %s33, 1
      %p135 = por %p133, %p134
      %p136 = scmp.ne.s32.totalorder %s127, %s128
      %p137 = scmp.eq.s32.totalorder %s33, 0
      %p138 = por %p136, %p137
      %p139 = scmp.ne.s32.totalorder %s127, %s128
      %p140 = scmp.eq.s32.totalorder %s34, 1
      %p141 = por %p139, %p140
      %p143 = scmp.ne.s32.totalorder %s128, %s142
      %p144 = scmp.eq.s32.totalorder %s34, 0
      %p145 = por %p143, %p144
      %s147 = sadd.s32 %s146, 1
      %p150 = scmp.eq.s32.totalorder %s28, 1
      %p151 = scmp.ne.s32.totalorder %s146, %s148
      %p152 = scmp.eq.s32.totalorder %s28, 0
      %p153 = por %p151, %p152
      %p154 = scmp.ne.s32.totalorder %s146, %s148
      %p155 = scmp.eq.s32.totalorder %s33, 1
      %p156 = por %p154, %p155
      %p157 = scmp.ne.s32.totalorder %s148, %s149
      %p158 = scmp.eq.s32.totalorder %s33, 0
      %p159 = por %p157, %p158
      %p160 = scmp.ne.s32.totalorder %s148, %s149
      %p161 = scmp.eq.s32.totalorder %s34, 1
      %p162 = por %p160, %p161
      %p164 = scmp.ne.s32.totalorder %s149, %s163
      %p165 = scmp.eq.s32.totalorder %s34, 0
      %p166 = por %p164, %p165
      %s168 = sadd.s32 %s167, 1
      %p171 = scmp.eq.s32.totalorder %s28, 1
      %p172 = scmp.ne.s32.totalorder %s167, %s169
      %p173 = scmp.eq.s32.totalorder %s28, 0
      %p174 = por %p172, %p173
      %p175 = scmp.ne.s32.totalorder %s167, %s169
      %p176 = scmp.eq.s32.totalorder %s33, 1
      %p177 = por %p175, %p176
      %p178 = scmp.ne.s32.totalorder %s169, %s170
      %p179 = scmp.eq.s32.totalorder %s33, 0
      %p180 = por %p178, %p179
      %p181 = scmp.ne.s32.totalorder %s169, %s170
      %p182 = scmp.eq.s32.totalorder %s34, 1
      %p183 = por %p181, %p182
      %p185 = scmp.ne.s32.totalorder %s170, %s184
      %p186 = scmp.eq.s32.totalorder %s34, 0
      %p187 = por %p185, %p186
      %s189 = sadd.s32 %s188, 1
      %p192 = scmp.eq.s32.totalorder %s28, 1
      %p193 = scmp.ne.s32.totalorder %s188, %s190
      %p194 = scmp.eq.s32.totalorder %s28, 0
      %p195 = por %p193, %p194
      %p196 = scmp.ne.s32.totalorder %s188, %s190
      %p197 = scmp.eq.s32.totalorder %s33, 1
      %p198 = por %p196, %p197
      %p199 = scmp.ne.s32.totalorder %s190, %s191
      %p200 = scmp.eq.s32.totalorder %s33, 0
      %p201 = por %p199, %p200
      %p202 = scmp.ne.s32.totalorder %s190, %s191
      %p203 = scmp.eq.s32.totalorder %s34, 1
      %p204 = por %p202, %p203
      %p206 = scmp.ne.s32.totalorder %s191, %s205
      %p207 = scmp.eq.s32.totalorder %s34, 0
      %p208 = por %p206, %p207
      %s210 = sadd.s32 %s209, 1
      %p213 = scmp.eq.s32.totalorder %s28, 1
      %p214 = scmp.ne.s32.totalorder %s209, %s211
      %p215 = scmp.eq.s32.totalorder %s28, 0
      %p216 = por %p214, %p215
      %p217 = scmp.ne.s32.totalorder %s209, %s211
      %p218 = scmp.eq.s32.totalorder %s33, 1
      %p219 = por %p217, %p218
      %p220 = scmp.ne.s32.totalorder %s211, %s212
      %p221 = scmp.eq.s32.totalorder %s33, 0
      %p222 = por %p220, %p221
      %p223 = scmp.ne.s32.totalorder %s211, %s212
      %p224 = scmp.eq.s32.totalorder %s34, 1
      %p225 = por %p223, %p224
      %p227 = scmp.ne.s32.totalorder %s212, %s226
      %p228 = scmp.eq.s32.totalorder %s34, 0
      %p229 = por %p227, %p228
      %s230 = ssub.s32 %s28, %s35
      %p231 = scmp.eq.s32.totalorder %s230, 0
      %s233 = sadd.s32 %s232, 1
      %s234 = scalar_select %p231, %s232, %s233
      %p237 = pneg %p231
      %p238 = scmp.eq.s32.totalorder %s28, 1
      %p239 = por %p237, %p238
      %p240 = scmp.ne.s32.totalorder %s232, %s235
      %p241 = scmp.eq.s32.totalorder %s28, 0
      %p242 = por %p240, %p241
      %p243 = scmp.ne.s32.totalorder %s232, %s235
      %p244 = scmp.eq.s32.totalorder %s33, 1
      %p245 = por %p243, %p244
      %p246 = scmp.ne.s32.totalorder %s235, %s236
      %p247 = scmp.eq.s32.totalorder %s33, 0
      %p248 = por %p246, %p247
      %p249 = scmp.ne.s32.totalorder %s235, %s236
      %p250 = scmp.eq.s32.totalorder %s34, 1
      %p251 = por %p249, %p250
      %p253 = scmp.ne.s32.totalorder %s236, %s252
      %p254 = scmp.eq.s32.totalorder %s34, 0
      %p255 = por %p253, %p254
      %s256 = ssub.s32 %s28, %s35
      %p257 = scmp.eq.s32.totalorder %s256, 0
      %s259 = sadd.s32 %s258, 1
      %s260 = scalar_select %p257, %s258, %s259
      %p263 = pneg %p257
      %p264 = scmp.eq.s32.totalorder %s28, 1
      %p265 = por %p263, %p264
      %p266 = scmp.ne.s32.totalorder %s258, %s261
      %p267 = scmp.eq.s32.totalorder %s28, 0
      %p268 = por %p266, %p267
      %p269 = scmp.ne.s32.totalorder %s258, %s261
      %p270 = scmp.eq.s32.totalorder %s33, 1
      %p271 = por %p269, %p270
      %p272 = scmp.ne.s32.totalorder %s261, %s262
      %p273 = scmp.eq.s32.totalorder %s33, 0
      %p274 = por %p272, %p273
      %p275 = scmp.ne.s32.totalorder %s261, %s262
      %p276 = scmp.eq.s32.totalorder %s34, 1
      %p277 = por %p275, %p276
      %p279 = scmp.ne.s32.totalorder %s262, %s278
      %p280 = scmp.eq.s32.totalorder %s34, 0
      %p281 = por %p279, %p280
      %p282 = scmp.le.s32.totalorder 1, %s28
      %p283 = scmp.lt.s32.totalorder %s28, 3
      %p284 = pnand %p282, %p283
      %p285 = pneg %p284
      // Predicated region
      $region9: #{tpu_custom_call.1} parent=5 // pred_check
        _
      $region10: #{tpu_custom_call.1} parent=5 // pred_check_branch
        %287 = sbr.rel (%p284) target = $region12
      $region11: #{tpu_custom_call.1} parent=5 // pred_region
        %s288 = ssub.s32 %s28, 1
        // Predicated region
        $region13: #{tpu_custom_call.1} parent=11 // pred_check
          %p289 = pneg %p75
        $region14: #{tpu_custom_call.1} parent=11 // pred_check_branch
          %291 = sbr.rel (%p289) target = $region16
        $region15: #{tpu_custom_call.1} parent=11 // pred_region
          %s293 = ssub.s32 256, 256
          %294 = vsyncadd [#allocation6], %s293
          %s295 = sshll.u32 [#allocation5], 4
          %s296 = int_to_ptr.vmem [resolvable:$true] %s295
          %301 = dma.hbm_to_vmem [thread:$0]  %s1, 256, %s296, [#allocation6], 64, 64, 4
        $region16: #{tpu_custom_call.1} parent=11 // pred_fallthru
          _
        // Predicated region
        $region17: #{tpu_custom_call.1} parent=11 // pred_check
          %p302 = pneg %p96
        $region18: #{tpu_custom_call.1} parent=11 // pred_check_branch
          %304 = sbr.rel (%p302) target = $region20
        $region19: #{tpu_custom_call.1} parent=11 // pred_region
          _
        $region20: #{tpu_custom_call.1} parent=11 // pred_fallthru
          _
        // Predicated region
        $region21: #{tpu_custom_call.1} parent=11 // pred_check
          %p305 = pneg %p117
        $region22: #{tpu_custom_call.1} parent=11 // pred_check_branch
          %307 = sbr.rel (%p305) target = $region24
        $region23: #{tpu_custom_call.1} parent=11 // pred_region
          %s309 = ssub.s32 256, 256
          %310 = vsyncadd [#allocation6], %s309
          %s311 = sshll.u32 [#allocation7], 4
          %s312 = int_to_ptr.vmem [resolvable:$true] %s311
          %317 = dma.hbm_to_vmem [thread:$0]  %s3, 256, %s312, [#allocation6], 64, 64, 4
        $region24: #{tpu_custom_call.1} parent=11 // pred_fallthru
          _
        // Predicated region
        $region25: #{tpu_custom_call.1} parent=11 // pred_check
          %p318 = pneg %p138
        $region26: #{tpu_custom_call.1} parent=11 // pred_check_branch
          %320 = sbr.rel (%p318) target = $region28
        $region27: #{tpu_custom_call.1} parent=11 // pred_region
          _
        $region28: #{tpu_custom_call.1} parent=11 // pred_fallthru
          _
        // Predicated region
        $region29: #{tpu_custom_call.1} parent=11 // pred_check
          %p321 = pneg %p159
        $region30: #{tpu_custom_call.1} parent=11 // pred_check_branch
          %323 = sbr.rel (%p321) target = $region32
        $region31: #{tpu_custom_call.1} parent=11 // pred_region
          _
        $region32: #{tpu_custom_call.1} parent=11 // pred_fallthru
          _
        // Predicated region
        $region33: #{tpu_custom_call.1} parent=11 // pred_check
          %p324 = pneg %p180
        $region34: #{tpu_custom_call.1} parent=11 // pred_check_branch
          %326 = sbr.rel (%p324) target = $region36
        $region35: #{tpu_custom_call.1} parent=11 // pred_region
          _
        $region36: #{tpu_custom_call.1} parent=11 // pred_fallthru
          _
        // Predicated region
        $region37: #{tpu_custom_call.1} parent=11 // pred_check
          %p327 = pneg %p201
        $region38: #{tpu_custom_call.1} parent=11 // pred_check_branch
          %329 = sbr.rel (%p327) target = $region40
        $region39: #{tpu_custom_call.1} parent=11 // pred_region
          %s331 = ssub.s32 256, 256
          %332 = vsyncadd [#allocation9], %s331
          %s333 = sshll.u32 [#allocation8], 4
          %s334 = int_to_ptr.vmem [resolvable:$true] %s333
          %339 = dma.hbm_to_vmem [thread:$0]  %s7, 256, %s334, [#allocation9], 64, 64, 4
        $region40: #{tpu_custom_call.1} parent=11 // pred_fallthru
          _
        // Predicated region
        $region41: #{tpu_custom_call.1} parent=11 // pred_check
          %p340 = pneg %p222
        $region42: #{tpu_custom_call.1} parent=11 // pred_check_branch
          %342 = sbr.rel (%p340) target = $region44
        $region43: #{tpu_custom_call.1} parent=11 // pred_region
          _
        $region44: #{tpu_custom_call.1} parent=11 // pred_fallthru
          _
      $region12: #{tpu_custom_call.1} parent=5 // pred_fallthru
        _
      %p343 = scmp.lt.s32.totalorder %s28, 2
      // Predicated region
      $region45: #{tpu_custom_call.1} parent=5 // pred_check
        %p344 = pneg %p343
      $region46: #{tpu_custom_call.1} parent=5 // pred_check_branch
        %346 = sbr.rel (%p344) target = $region48
      $region47: #{tpu_custom_call.1} parent=5 // pred_region
        // Predicated region
        $region49: #{tpu_custom_call.1} parent=47 // pred_check
          %p347 = pneg %p48
        $region50: #{tpu_custom_call.1} parent=47 // pred_check_branch
          %349 = sbr.rel (%p347) target = $region52
        $region51: #{tpu_custom_call.1} parent=47 // pred_region
          %s350 = sand.u32 %s38, 1
          %s351 = scalar_lea.sflag [#allocation3], %s350
          %s352 = sand.u32 %s38, 1
          %s353 = smul.addr %s352, 8
          %s354 = scalar_lea.vmem [#allocation2], %s353
          %s356 = ssub.s32 128, 128
          %357 = vsyncadd %s351, %s356
          %s358 = smul.addr %s28, 128
          %s359 = scalar_lea.hbm %s0, %s358
          %s361 = sshll.u32 %s354, 4
          %s362 = int_to_ptr.vmem [resolvable:$true] %s361
          %364 = dma.hbm_to_vmem [thread:$0]  %s359, 128, %s362, %s351
        $region52: #{tpu_custom_call.1} parent=47 // pred_fallthru
          _
      $region48: #{tpu_custom_call.1} parent=5 // pred_fallthru
        _
      %p365 = scmp.le.s32.totalorder 1, %s28
      %p366 = scmp.lt.s32.totalorder %s28, 3
      %p367 = pnand %p365, %p366
      %p368 = pneg %p367
      // Predicated region
      $region53: #{tpu_custom_call.1} parent=5 // pred_check
        _
      $region54: #{tpu_custom_call.1} parent=5 // pred_check_branch
        %370 = sbr.rel (%p367) target = $region56
      $region55: #{tpu_custom_call.1} parent=5 // pred_region
        %s371 = ssub.s32 %s28, 1
        %s372 = sand.u32 %s41, 1
        %s373 = scalar_lea.sflag [#allocation3], %s372
        %s374 = sand.u32 %s41, 1
        %s375 = smul.addr %s374, 8
        %s376 = scalar_lea.vmem [#allocation2], %s375
        // Predicated region
        $region57: #{tpu_custom_call.1} parent=55 // pred_check
          %p377 = pneg %p54
        $region58: #{tpu_custom_call.1} parent=55 // pred_check_branch
          %379 = sbr.rel (%p377) target = $region60
        $region59: #{tpu_custom_call.1} parent=55 // pred_region
          %380 = dma.done %s373, 128
        $region60: #{tpu_custom_call.1} parent=55 // pred_fallthru
          _
        // Predicated region
        $region61: #{tpu_custom_call.1} parent=55 // pred_check
          %p381 = pneg %p75
        $region62: #{tpu_custom_call.1} parent=55 // pred_check_branch
          %383 = sbr.rel (%p381) target = $region64
        $region63: #{tpu_custom_call.1} parent=55 // pred_region
          %384 = dma.done [#allocation6], 256
        $region64: #{tpu_custom_call.1} parent=55 // pred_fallthru
          _
        // Predicated region
        $region65: #{tpu_custom_call.1} parent=55 // pred_check
          %p385 = pneg %p117
        $region66: #{tpu_custom_call.1} parent=55 // pred_check_branch
          %387 = sbr.rel (%p385) target = $region68
        $region67: #{tpu_custom_call.1} parent=55 // pred_region
          %388 = dma.done [#allocation6], 256
        $region68: #{tpu_custom_call.1} parent=55 // pred_fallthru
          _
        // Predicated region
        $region69: #{tpu_custom_call.1} parent=55 // pred_check
          %p389 = pneg %p201
        $region70: #{tpu_custom_call.1} parent=55 // pred_check_branch
          %391 = sbr.rel (%p389) target = $region72
        $region71: #{tpu_custom_call.1} parent=55 // pred_region
          %392 = dma.done [#allocation9], 256
        $region72: #{tpu_custom_call.1} parent=55 // pred_fallthru
          _
        %s393 = sand.u32 %s41, 1
        %s394 = scalar_lea.sflag [#allocation3], %s393
        %s395 = sand.u32 %s41, 1
        %s396 = smul.addr %s395, 8
        %s397 = scalar_lea.vmem [#allocation2], %s396
        %p398 = pneg %p54
        %p399 = pneg %p51
        %p400 = pneg %p75
        %p401 = pneg %p72
        %p402 = pneg %p96
        %p403 = pneg %p93
        %p404 = pneg %p117
        %p405 = pneg %p114
        %p406 = pneg %p138
        %p407 = pneg %p135
        %p408 = pneg %p159
        %p409 = pneg %p156
        %p410 = pneg %p180
        %p411 = pneg %p177
        %p412 = pneg %p201
        %p413 = pneg %p198
        %p414 = pneg %p222
        %p415 = pneg %p219
        %p416 = pneg %p248
        %p417 = pneg %p245
        %s418 = sand.u32 %s235, 1
        %s419 = scalar_lea.sflag [#allocation4], %s418
        %s420 = sand.u32 %s235, 1
        %s421 = smul.addr %s420, 8
        %s422 = scalar_lea.vmem [#allocation10], %s421
        %p423 = pneg %p274
        %p424 = pneg %p271
        %s425 = sand.u32 %s261, 1
        %s426 = scalar_lea.sflag [#allocation12], %s425
        %s427 = sand.u32 %s261, 1
        %s428 = smul.addr %s427, 32
        %s429 = scalar_lea.vmem [#allocation11], %s428
        %v431 = vld [vmem:[%s376] sm:$0xff]
        %v432 = vpack.c.bf16 %v431, %v431
        %v433 = vld [vmem:[#allocation5] sm:$0xf]
        %v434 = vld [vmem:[#allocation5 + $0x4] sm:$0xf]
        %v435 = vld [vmem:[#allocation5 + $0x8] sm:$0xf]
        %v436 = vld [vmem:[#allocation5 + $0xc] sm:$0xf]
        %v437 = vld [vmem:[%s2] sm:$0x1]
        %v439 = vlaneseq
        %v440 = vshrl.u32 %v439, 7
        %v441 = vsub.s32 0, %v440
        %v442 = vrot.slane %v437, %v441
        %v448 = vunpack.c.l.b16 %v433
        %v449 = vunpack.c.l.b16 %v434
        %v450 = vunpack.c.l.b16 %v435
        %v451 = vunpack.c.l.b16 %v436
        %v452 = vpack.c.b16 %v449, %v448
        %v453 = vpack.c.b16 %v451, %v450
        %vm456 = vcmask 261120
        %v458 = vsel %vm456, %v432, 0
        %460 = vmatprep.subr.bf16.mxu0 0
        %461 = vmatpush1.bf16.msra.mxu0 %v452
        %462 = vmatprep.subr.bf16.mxu0 0
        %463 = vmatpush1.bf16.msra.mxu0 %v453
        %464 = vmatprep.subr.bf16.mxu0 0
        %465 = vmatpush1.bf16.msra.mxu0 0
        %466 = vmatprep.subr.bf16.mxu0 0
        %467 = vmatpush1.bf16.msra.mxu0 0
        %468 = vmatprep.subr.bf16.mxu0 0
        %469 = vmatpush1.bf16.msra.mxu0 0
        %470 = vmatprep.subr.bf16.mxu0 0
        %471 = vmatpush1.bf16.msra.mxu0 0
        %472 = vmatprep.subr.bf16.mxu0 0
        %473 = vmatpush1.bf16.msra.mxu0 0
        %474 = vmatprep.subr.bf16.mxu0 0
        %475 = vmatpush1.bf16.msra.mxu0 0
        %476 = vmatprep.subr.bf16.mxu0 0
        %477 = vmatpush1.bf16.msra.mxu0 0
        %478 = vmatprep.subr.bf16.mxu0 0
        %479 = vmatpush1.bf16.msra.mxu0 0
        %480 = vmatprep.subr.bf16.mxu0 0
        %481 = vmatpush1.bf16.msra.mxu0 0
        %482 = vmatprep.subr.bf16.mxu0 0
        %483 = vmatpush1.bf16.msra.mxu0 0
        %484 = vmatprep.subr.bf16.mxu0 0
        %485 = vmatpush1.bf16.msra.mxu0 0
        %486 = vmatprep.subr.bf16.mxu0 0
        %487 = vmatpush1.bf16.msra.mxu0 0
        %488 = vmatprep.subr.bf16.mxu0 0
        %489 = vmatpush1.bf16.msra.mxu0 0
        %490 = vmatprep.subr.bf16.mxu0 0
        %491 = vmatpush1.bf16.msra.mxu0 0
        %492 = vmatprep.mubr.bf16.mxu0 0
        %493 = vmatmul.mubr.bf16.gmra.mrb[0].mxu0 %v458
        %v494 = vpop.f32.mrb[0].mxu0
        %v495 = vadd.f32 %v442, %v494
        %v496 = vpop.f32.mrb[0].mxu0
        %v497 = vpop.f32.mrb[0].mxu0
        %v498 = vpop.f32.mrb[0].mxu0
        %499 = vdwg.mxu0
        %v500 = vld [vmem:[#allocation7] sm:$0xf]
        %v501 = vld [vmem:[#allocation7 + $0x4] sm:$0xf]
        %v502 = vld [vmem:[#allocation7 + $0x8] sm:$0xf]
        %v503 = vld [vmem:[#allocation7 + $0xc] sm:$0xf]
        %v504 = vld [vmem:[%s4] sm:$0x1]
        %v506 = vlaneseq
        %v507 = vshrl.u32 %v506, 7
        %v508 = vsub.s32 0, %v507
        %v509 = vrot.slane %v504, %v508
        %v515 = vunpack.c.l.b16 %v500
        %v516 = vunpack.c.l.b16 %v501
        %v517 = vunpack.c.l.b16 %v502
        %v518 = vunpack.c.l.b16 %v503
        %v519 = vpack.c.b16 %v516, %v515
        %v520 = vpack.c.b16 %v518, %v517
        %523 = vmatprep.subr.bf16.mxu0 0
        %524 = vmatpush1.bf16.msra.mxu0 %v519
        %525 = vmatprep.subr.bf16.mxu0 0
        %526 = vmatpush1.bf16.msra.mxu0 %v520
        %527 = vmatprep.subr.bf16.mxu0 0
        %528 = vmatpush1.bf16.msra.mxu0 0
        %529 = vmatprep.subr.bf16.mxu0 0
        %530 = vmatpush1.bf16.msra.mxu0 0
        %531 = vmatprep.subr.bf16.mxu0 0
        %532 = vmatpush1.bf16.msra.mxu0 0
        %533 = vmatprep.subr.bf16.mxu0 0
        %534 = vmatpush1.bf16.msra.mxu0 0
        %535 = vmatprep.subr.bf16.mxu0 0
        %536 = vmatpush1.bf16.msra.mxu0 0
        %537 = vmatprep.subr.bf16.mxu0 0
        %538 = vmatpush1.bf16.msra.mxu0 0
        %539 = vmatprep.subr.bf16.mxu0 0
        %540 = vmatpush1.bf16.msra.mxu0 0
        %541 = vmatprep.subr.bf16.mxu0 0
        %542 = vmatpush1.bf16.msra.mxu0 0
        %543 = vmatprep.subr.bf16.mxu0 0
        %544 = vmatpush1.bf16.msra.mxu0 0
        %545 = vmatprep.subr.bf16.mxu0 0
        %546 = vmatpush1.bf16.msra.mxu0 0
        %547 = vmatprep.subr.bf16.mxu0 0
        %548 = vmatpush1.bf16.msra.mxu0 0
        %549 = vmatprep.subr.bf16.mxu0 0
        %550 = vmatpush1.bf16.msra.mxu0 0
        %551 = vmatprep.subr.bf16.mxu0 0
        %552 = vmatpush1.bf16.msra.mxu0 0
        %553 = vmatprep.subr.bf16.mxu0 0
        %554 = vmatpush1.bf16.msra.mxu0 0
        %555 = vmatprep.mubr.bf16.mxu0 0
        %556 = vmatmul.mubr.bf16.gmra.mrb[0].mxu0 %v458
        %v557 = vpop.f32.mrb[0].mxu0
        %v558 = vadd.f32 %v509, %v557
        %v559 = vpop.f32.mrb[0].mxu0
        %v560 = vpop.f32.mrb[0].mxu0
        %v561 = vpop.f32.mrb[0].mxu0
        %562 = vdwg.mxu0
        %v563 = vld [vmem:[%s5] sm:$0xf]
        %v564 = vld [vmem:[%s5 + $0x4] sm:$0xf]
        %v565 = vld [vmem:[%s5 + $0x8] sm:$0xf]
        %v566 = vld [vmem:[%s5 + $0xc] sm:$0xf]
        %v567 = vld [vmem:[%s6] sm:$0x1]
        %v569 = vlaneseq
        %v570 = vshrl.u32 %v569, 7
        %v571 = vsub.s32 0, %v570
        %v572 = vrot.slane %v567, %v571
        %v578 = vunpack.c.l.b16 %v563
        %v579 = vunpack.c.l.b16 %v564
        %v580 = vunpack.c.l.b16 %v565
        %v581 = vunpack.c.l.b16 %v566
        %v582 = vpack.c.b16 %v579, %v578
        %v583 = vpack.c.b16 %v581, %v580
        %586 = vmatprep.subr.bf16.mxu0 0
        %587 = vmatpush1.bf16.msra.mxu0 %v582
        %588 = vmatprep.subr.bf16.mxu0 0
        %589 = vmatpush1.bf16.msra.mxu0 %v583
        %590 = vmatprep.subr.bf16.mxu0 0
        %591 = vmatpush1.bf16.msra.mxu0 0
        %592 = vmatprep.subr.bf16.mxu0 0
        %593 = vmatpush1.bf16.msra.mxu0 0
        %594 = vmatprep.subr.bf16.mxu0 0
        %595 = vmatpush1.bf16.msra.mxu0 0
        %596 = vmatprep.subr.bf16.mxu0 0
        %597 = vmatpush1.bf16.msra.mxu0 0
        %598 = vmatprep.subr.bf16.mxu0 0
        %599 = vmatpush1.bf16.msra.mxu0 0
        %600 = vmatprep.subr.bf16.mxu0 0
        %601 = vmatpush1.bf16.msra.mxu0 0
        %602 = vmatprep.subr.bf16.mxu0 0
        %603 = vmatpush1.bf16.msra.mxu0 0
        %604 = vmatprep.subr.bf16.mxu0 0
        %605 = vmatpush1.bf16.msra.mxu0 0
        %606 = vmatprep.subr.bf16.mxu0 0
        %607 = vmatpush1.bf16.msra.mxu0 0
        %608 = vmatprep.subr.bf16.mxu0 0
        %609 = vmatpush1.bf16.msra.mxu0 0
        %610 = vmatprep.subr.bf16.mxu0 0
        %611 = vmatpush1.bf16.msra.mxu0 0
        %612 = vmatprep.subr.bf16.mxu0 0
        %613 = vmatpush1.bf16.msra.mxu0 0
        %614 = vmatprep.subr.bf16.mxu0 0
        %615 = vmatpush1.bf16.msra.mxu0 0
        %616 = vmatprep.subr.bf16.mxu0 0
        %617 = vmatpush1.bf16.msra.mxu0 0
        %618 = vmatprep.mubr.bf16.mxu0 0
        %619 = vmatmul.mubr.bf16.gmra.mrb[0].mxu0 %v458
        %v620 = vpop.f32.mrb[0].mxu0
        %v621 = vadd.f32 %v572, %v620
        %v622 = vpop.f32.mrb[0].mxu0
        %v623 = vpop.f32.mrb[0].mxu0
        %v624 = vpop.f32.mrb[0].mxu0
        %625 = vdwg.mxu0
        %v626 = vmul.f32 %v495, 0.35355338
        %628 = vrot.lane.b32.xlu0 %v626, 120
        %v629 = vpop.permute.xlu0 %628
        %631 = vrot.lane.b32.xlu0 %v626, 112
        %v632 = vpop.permute.xlu0 %631
        %634 = vrot.lane.b32.xlu0 %v626, 104
        %v635 = vpop.permute.xlu0 %634
        %v637 = vcombine.low %v626, %v632
        %v638 = vcombine.high %v626, %v632
        %v640 = vunpack.c.l.s4 1983009808
        %v641 = vunpack.c.0.s8 %v640
        %v642 = vlaneseq
        %v643 = vshrl.u32 %v642, 7
        %v644 = vsub.s32 %v641, %v643
        %v645 = vrot.slane %v637, %v644
        %v647 = vunpack.c.l.s4 1983009808
        %v648 = vunpack.c.0.s8 %v647
        %v649 = vlaneseq
        %v650 = vshrl.u32 %v649, 7
        %v651 = vsub.s32 %v648, %v650
        %v652 = vrot.slane %v638, %v651
        %v653 = vcombine.low %v629, %v635
        %v654 = vcombine.high %v629, %v635
        %v656 = vunpack.c.l.s4 1983009808
        %v657 = vunpack.c.0.s8 %v656
        %v658 = vlaneseq
        %v659 = vshrl.u32 %v658, 7
        %v660 = vsub.s32 %v657, %v659
        %v661 = vrot.slane %v653, %v660
        %v663 = vunpack.c.l.s4 1983009808
        %v664 = vunpack.c.0.s8 %v663
        %v665 = vlaneseq
        %v666 = vshrl.u32 %v665, 7
        %v667 = vsub.s32 %v664, %v666
        %v668 = vrot.slane %v654, %v667
        %v669 = vcombine.low %v645, %v661
        %v670 = vcombine.high %v645, %v661
        %v672 = vunpack.c.l.s4 1934713408
        %v673 = vunpack.c.0.s8 %v672
        %v674 = vlaneseq
        %v675 = vshrl.u32 %v674, 7
        %v676 = vsub.s32 %v673, %v675
        %v677 = vrot.slane %v669, %v676
        %v679 = vunpack.c.l.s4 1934713408
        %v680 = vunpack.c.0.s8 %v679
        %v681 = vlaneseq
        %v682 = vshrl.u32 %v681, 7
        %v683 = vsub.s32 %v680, %v682
        %v684 = vrot.slane %v670, %v683
        %v685 = vcombine.low %v652, %v668
        %v686 = vcombine.high %v652, %v668
        %v688 = vunpack.c.l.s4 1934713408
        %v689 = vunpack.c.0.s8 %v688
        %v690 = vlaneseq
        %v691 = vshrl.u32 %v690, 7
        %v692 = vsub.s32 %v689, %v691
        %v693 = vrot.slane %v685, %v692
        %v695 = vunpack.c.l.s4 1934713408
        %v696 = vunpack.c.0.s8 %v695
        %v697 = vlaneseq
        %v698 = vshrl.u32 %v697, 7
        %v699 = vsub.s32 %v696, %v698
        %v700 = vrot.slane %v686, %v699
        %v701 = vcombine.high %v677, 0.0
        %v702 = vcombine.high %v684, 0.0
        %v703 = vcombine.high %v693, 0.0
        %v704 = vcombine.high %v700, 0.0
        %v705 = vcombine.low %v677, %v684
        %v707 = vunpack.c.l.s4 1983009808
        %v708 = vunpack.c.0.s8 %v707
        %v709 = vlaneseq
        %v710 = vshrl.u32 %v709, 7
        %v711 = vsub.s32 %v708, %v710
        %v712 = vrot.slane %v705, %v711
        %v713 = vcombine.low %v701, %v702
        %v715 = vunpack.c.l.s4 1983009808
        %v716 = vunpack.c.0.s8 %v715
        %v717 = vlaneseq
        %v718 = vshrl.u32 %v717, 7
        %v719 = vsub.s32 %v716, %v718
        %v720 = vrot.slane %v713, %v719
        %v721 = vcombine.low %v693, %v700
        %v723 = vunpack.c.l.s4 1983009808
        %v724 = vunpack.c.0.s8 %v723
        %v725 = vlaneseq
        %v726 = vshrl.u32 %v725, 7
        %v727 = vsub.s32 %v724, %v726
        %v728 = vrot.slane %v721, %v727
        %v729 = vcombine.low %v703, %v704
        %v731 = vunpack.c.l.s4 1983009808
        %v732 = vunpack.c.0.s8 %v731
        %v733 = vlaneseq
        %v734 = vshrl.u32 %v733, 7
        %v735 = vsub.s32 %v732, %v734
        %v736 = vrot.slane %v729, %v735
        %v737 = vcombine.low %v712, %v720
        %v738 = vcombine.high %v712, %v720
        %v740 = vunpack.c.l.s4 1934713408
        %v741 = vunpack.c.0.s8 %v740
        %v742 = vlaneseq
        %v743 = vshrl.u32 %v742, 7
        %v744 = vsub.s32 %v741, %v743
        %v745 = vrot.slane %v737, %v744
        %v747 = vunpack.c.l.s4 1934713408
        %v748 = vunpack.c.0.s8 %v747
        %v749 = vlaneseq
        %v750 = vshrl.u32 %v749, 7
        %v751 = vsub.s32 %v748, %v750
        %v752 = vrot.slane %v738, %v751
        %v753 = vcombine.low %v728, %v736
        %v754 = vcombine.high %v728, %v736
        %v756 = vunpack.c.l.s4 1934713408
        %v757 = vunpack.c.0.s8 %v756
        %v758 = vlaneseq
        %v759 = vshrl.u32 %v758, 7
        %v760 = vsub.s32 %v757, %v759
        %v761 = vrot.slane %v753, %v760
        %v763 = vunpack.c.l.s4 1934713408
        %v764 = vunpack.c.0.s8 %v763
        %v765 = vlaneseq
        %v766 = vshrl.u32 %v765, 7
        %v767 = vsub.s32 %v764, %v766
        %v768 = vrot.slane %v754, %v767
        %v769 = vcombine.low %v745, %v761
        %v770 = vcombine.high %v745, %v761
        %v771 = vcombine.low %v752, %v768
        %v772 = vcombine.high %v752, %v768
        %v773 = vpack.c.bf16 %v769, %v769
        %v774 = vpack.c.bf16 %v770, %v770
        %v775 = vpack.c.bf16 %v771, %v771
        %v776 = vpack.c.bf16 %v772, %v772
        %778 = vrot.lane.b32.xlu0 %v558, 120
        %v779 = vpop.permute.xlu0 %778
        %781 = vrot.lane.b32.xlu0 %v558, 112
        %v782 = vpop.permute.xlu0 %781
        %784 = vrot.lane.b32.xlu0 %v558, 104
        %v785 = vpop.permute.xlu0 %784
        %v787 = vcombine.low %v558, %v782
        %v788 = vcombine.high %v558, %v782
        %v790 = vunpack.c.l.s4 1983009808
        %v791 = vunpack.c.0.s8 %v790
        %v792 = vlaneseq
        %v793 = vshrl.u32 %v792, 7
        %v794 = vsub.s32 %v791, %v793
        %v795 = vrot.slane %v787, %v794
        %v797 = vunpack.c.l.s4 1983009808
        %v798 = vunpack.c.0.s8 %v797
        %v799 = vlaneseq
        %v800 = vshrl.u32 %v799, 7
        %v801 = vsub.s32 %v798, %v800
        %v802 = vrot.slane %v788, %v801
        %v803 = vcombine.low %v779, %v785
        %v804 = vcombine.high %v779, %v785
        %v806 = vunpack.c.l.s4 1983009808
        %v807 = vunpack.c.0.s8 %v806
        %v808 = vlaneseq
        %v809 = vshrl.u32 %v808, 7
        %v810 = vsub.s32 %v807, %v809
        %v811 = vrot.slane %v803, %v810
        %v813 = vunpack.c.l.s4 1983009808
        %v814 = vunpack.c.0.s8 %v813
        %v815 = vlaneseq
        %v816 = vshrl.u32 %v815, 7
        %v817 = vsub.s32 %v814, %v816
        %v818 = vrot.slane %v804, %v817
        %v819 = vcombine.low %v795, %v811
        %v820 = vcombine.high %v795, %v811
        %v822 = vunpack.c.l.s4 1934713408
        %v823 = vunpack.c.0.s8 %v822
        %v824 = vlaneseq
        %v825 = vshrl.u32 %v824, 7
        %v826 = vsub.s32 %v823, %v825
        %v827 = vrot.slane %v819, %v826
        %v829 = vunpack.c.l.s4 1934713408
        %v830 = vunpack.c.0.s8 %v829
        %v831 = vlaneseq
        %v832 = vshrl.u32 %v831, 7
        %v833 = vsub.s32 %v830, %v832
        %v834 = vrot.slane %v820, %v833
        %v835 = vcombine.low %v802, %v818
        %v836 = vcombine.high %v802, %v818
        %v838 = vunpack.c.l.s4 1934713408
        %v839 = vunpack.c.0.s8 %v838
        %v840 = vlaneseq
        %v841 = vshrl.u32 %v840, 7
        %v842 = vsub.s32 %v839, %v841
        %v843 = vrot.slane %v835, %v842
        %v845 = vunpack.c.l.s4 1934713408
        %v846 = vunpack.c.0.s8 %v845
        %v847 = vlaneseq
        %v848 = vshrl.u32 %v847, 7
        %v849 = vsub.s32 %v846, %v848
        %v850 = vrot.slane %v836, %v849
        %v851 = vcombine.high %v827, 0.0
        %v852 = vcombine.high %v834, 0.0
        %v853 = vcombine.high %v843, 0.0
        %v854 = vcombine.high %v850, 0.0
        %v855 = vcombine.low %v827, %v834
        %v857 = vunpack.c.l.s4 1983009808
        %v858 = vunpack.c.0.s8 %v857
        %v859 = vlaneseq
        %v860 = vshrl.u32 %v859, 7
        %v861 = vsub.s32 %v858, %v860
        %v862 = vrot.slane %v855, %v861
        %v863 = vcombine.low %v851, %v852
        %v865 = vunpack.c.l.s4 1983009808
        %v866 = vunpack.c.0.s8 %v865
        %v867 = vlaneseq
        %v868 = vshrl.u32 %v867, 7
        %v869 = vsub.s32 %v866, %v868
        %v870 = vrot.slane %v863, %v869
        %v871 = vcombine.low %v843, %v850
        %v873 = vunpack.c.l.s4 1983009808
        %v874 = vunpack.c.0.s8 %v873
        %v875 = vlaneseq
        %v876 = vshrl.u32 %v875, 7
        %v877 = vsub.s32 %v874, %v876
        %v878 = vrot.slane %v871, %v877
        %v879 = vcombine.low %v853, %v854
        %v881 = vunpack.c.l.s4 1983009808
        %v882 = vunpack.c.0.s8 %v881
        %v883 = vlaneseq
        %v884 = vshrl.u32 %v883, 7
        %v885 = vsub.s32 %v882, %v884
        %v886 = vrot.slane %v879, %v885
        %v887 = vcombine.low %v862, %v870
        %v888 = vcombine.high %v862, %v870
        %v890 = vunpack.c.l.s4 1934713408
        %v891 = vunpack.c.0.s8 %v890
        %v892 = vlaneseq
        %v893 = vshrl.u32 %v892, 7
        %v894 = vsub.s32 %v891, %v893
        %v895 = vrot.slane %v887, %v894
        %v897 = vunpack.c.l.s4 1934713408
        %v898 = vunpack.c.0.s8 %v897
        %v899 = vlaneseq
        %v900 = vshrl.u32 %v899, 7
        %v901 = vsub.s32 %v898, %v900
        %v902 = vrot.slane %v888, %v901
        %v903 = vcombine.low %v878, %v886
        %v904 = vcombine.high %v878, %v886
        %v906 = vunpack.c.l.s4 1934713408
        %v907 = vunpack.c.0.s8 %v906
        %v908 = vlaneseq
        %v909 = vshrl.u32 %v908, 7
        %v910 = vsub.s32 %v907, %v909
        %v911 = vrot.slane %v903, %v910
        %v913 = vunpack.c.l.s4 1934713408
        %v914 = vunpack.c.0.s8 %v913
        %v915 = vlaneseq
        %v916 = vshrl.u32 %v915, 7
        %v917 = vsub.s32 %v914, %v916
        %v918 = vrot.slane %v904, %v917
        %v919 = vcombine.low %v895, %v911
        %v920 = vcombine.high %v895, %v911
        %v921 = vcombine.low %v902, %v918
        %v922 = vcombine.high %v902, %v918
        %v923 = vpack.c.bf16 %v919, %v919
        %v924 = vpack.c.bf16 %v920, %v920
        %v925 = vpack.c.bf16 %v921, %v921
        %v926 = vpack.c.bf16 %v922, %v922
        %928 = vrot.lane.b32.xlu0 %v621, 120
        %v929 = vpop.permute.xlu0 %928
        %931 = vrot.lane.b32.xlu0 %v621, 112
        %v932 = vpop.permute.xlu0 %931
        %934 = vrot.lane.b32.xlu0 %v621, 104
        %v935 = vpop.permute.xlu0 %934
        %v937 = vcombine.low %v621, %v932
        %v938 = vcombine.high %v621, %v932
        %v940 = vunpack.c.l.s4 1983009808
        %v941 = vunpack.c.0.s8 %v940
        %v942 = vlaneseq
        %v943 = vshrl.u32 %v942, 7
        %v944 = vsub.s32 %v941, %v943
        %v945 = vrot.slane %v937, %v944
        %v947 = vunpack.c.l.s4 1983009808
        %v948 = vunpack.c.0.s8 %v947
        %v949 = vlaneseq
        %v950 = vshrl.u32 %v949, 7
        %v951 = vsub.s32 %v948, %v950
        %v952 = vrot.slane %v938, %v951
        %v953 = vcombine.low %v929, %v935
        %v954 = vcombine.high %v929, %v935
        %v956 = vunpack.c.l.s4 1983009808
        %v957 = vunpack.c.0.s8 %v956
        %v958 = vlaneseq
        %v959 = vshrl.u32 %v958, 7
        %v960 = vsub.s32 %v957, %v959
        %v961 = vrot.slane %v953, %v960
        %v963 = vunpack.c.l.s4 1983009808
        %v964 = vunpack.c.0.s8 %v963
        %v965 = vlaneseq
        %v966 = vshrl.u32 %v965, 7
        %v967 = vsub.s32 %v964, %v966
        %v968 = vrot.slane %v954, %v967
        %v969 = vcombine.low %v945, %v961
        %v970 = vcombine.high %v945, %v961
        %v972 = vunpack.c.l.s4 1934713408
        %v973 = vunpack.c.0.s8 %v972
        %v974 = vlaneseq
        %v975 = vshrl.u32 %v974, 7
        %v976 = vsub.s32 %v973, %v975
        %v977 = vrot.slane %v969, %v976
        %v979 = vunpack.c.l.s4 1934713408
        %v980 = vunpack.c.0.s8 %v979
        %v981 = vlaneseq
        %v982 = vshrl.u32 %v981, 7
        %v983 = vsub.s32 %v980, %v982
        %v984 = vrot.slane %v970, %v983
        %v985 = vcombine.low %v952, %v968
        %v986 = vcombine.high %v952, %v968
        %v988 = vunpack.c.l.s4 1934713408
        %v989 = vunpack.c.0.s8 %v988
        %v990 = vlaneseq
        %v991 = vshrl.u32 %v990, 7
        %v992 = vsub.s32 %v989, %v991
        %v993 = vrot.slane %v985, %v992
        %v995 = vunpack.c.l.s4 1934713408
        %v996 = vunpack.c.0.s8 %v995
        %v997 = vlaneseq
        %v998 = vshrl.u32 %v997, 7
        %v999 = vsub.s32 %v996, %v998
        %v1000 = vrot.slane %v986, %v999
        %v1001 = vcombine.high %v977, 0.0
        %v1002 = vcombine.high %v984, 0.0
        %v1003 = vcombine.high %v993, 0.0
        %v1004 = vcombine.high %v1000, 0.0
        %v1005 = vcombine.low %v977, %v984
        %v1007 = vunpack.c.l.s4 1983009808
        %v1008 = vunpack.c.0.s8 %v1007
        %v1009 = vlaneseq
        %v1010 = vshrl.u32 %v1009, 7
        %v1011 = vsub.s32 %v1008, %v1010
        %v1012 = vrot.slane %v1005, %v1011
        %v1013 = vcombine.low %v1001, %v1002
        %v1015 = vunpack.c.l.s4 1983009808
        %v1016 = vunpack.c.0.s8 %v1015
        %v1017 = vlaneseq
        %v1018 = vshrl.u32 %v1017, 7
        %v1019 = vsub.s32 %v1016, %v1018
        %v1020 = vrot.slane %v1013, %v1019
        %v1021 = vcombine.low %v993, %v1000
        %v1023 = vunpack.c.l.s4 1983009808
        %v1024 = vunpack.c.0.s8 %v1023
        %v1025 = vlaneseq
        %v1026 = vshrl.u32 %v1025, 7
        %v1027 = vsub.s32 %v1024, %v1026
        %v1028 = vrot.slane %v1021, %v1027
        %v1029 = vcombine.low %v1003, %v1004
        %v1031 = vunpack.c.l.s4 1983009808
        %v1032 = vunpack.c.0.s8 %v1031
        %v1033 = vlaneseq
        %v1034 = vshrl.u32 %v1033, 7
        %v1035 = vsub.s32 %v1032, %v1034
        %v1036 = vrot.slane %v1029, %v1035
        %v1037 = vcombine.low %v1012, %v1020
        %v1038 = vcombine.high %v1012, %v1020
        %v1040 = vunpack.c.l.s4 1934713408
        %v1041 = vunpack.c.0.s8 %v1040
        %v1042 = vlaneseq
        %v1043 = vshrl.u32 %v1042, 7
        %v1044 = vsub.s32 %v1041, %v1043
        %v1045 = vrot.slane %v1037, %v1044
        %v1047 = vunpack.c.l.s4 1934713408
        %v1048 = vunpack.c.0.s8 %v1047
        %v1049 = vlaneseq
        %v1050 = vshrl.u32 %v1049, 7
        %v1051 = vsub.s32 %v1048, %v1050
        %v1052 = vrot.slane %v1038, %v1051
        %v1053 = vcombine.low %v1028, %v1036
        %v1054 = vcombine.high %v1028, %v1036
        %v1056 = vunpack.c.l.s4 1934713408
        %v1057 = vunpack.c.0.s8 %v1056
        %v1058 = vlaneseq
        %v1059 = vshrl.u32 %v1058, 7
        %v1060 = vsub.s32 %v1057, %v1059
        %v1061 = vrot.slane %v1053, %v1060
        %v1063 = vunpack.c.l.s4 1934713408
        %v1064 = vunpack.c.0.s8 %v1063
        %v1065 = vlaneseq
        %v1066 = vshrl.u32 %v1065, 7
        %v1067 = vsub.s32 %v1064, %v1066
        %v1068 = vrot.slane %v1054, %v1067
        %v1069 = vcombine.low %v1045, %v1061
        %v1070 = vcombine.high %v1045, %v1061
        %v1071 = vcombine.low %v1052, %v1068
        %v1072 = vcombine.high %v1052, %v1068
        %v1073 = vpack.c.bf16 %v1069, %v1069
        %v1074 = vpack.c.bf16 %v1070, %v1070
        %v1075 = vpack.c.bf16 %v1071, %v1071
        %v1076 = vpack.c.bf16 %v1072, %v1072
        %vm1077 = vcmask 64512
        %v1079 = vsel %vm1077, %v773, 0
        %v1082 = vsel %vm1077, %v923, 0
        %1084 = vmatprep.subr.bf16.mxu0 0
        %1085 = vmatpush1.bf16.xpose.msra.mxu0 %v1082
        %1086 = vmatprep.subr.bf16.mxu0 0
        %1087 = vmatpush1.bf16.xpose.msra.mxu0 0
        %1088 = vmatprep.subr.bf16.mxu0 0
        %1089 = vmatpush1.bf16.xpose.msra.mxu0 0
        %1090 = vmatprep.subr.bf16.mxu0 0
        %1091 = vmatpush1.bf16.xpose.msra.mxu0 0
        %1092 = vmatprep.subr.bf16.mxu0 0
        %1093 = vmatpush1.bf16.xpose.msra.mxu0 0
        %1094 = vmatprep.subr.bf16.mxu0 0
        %1095 = vmatpush1.bf16.xpose.msra.mxu0 0
        %1096 = vmatprep.subr.bf16.mxu0 0
        %1097 = vmatpush1.bf16.xpose.msra.mxu0 0
        %1098 = vmatprep.subr.bf16.mxu0 0
        %1099 = vmatpush1.bf16.xpose.msra.mxu0 0
        %1100 = vmatprep.subr.bf16.mxu0 0
        %1101 = vmatpush1.bf16.xpose.msra.mxu0 0
        %1102 = vmatprep.subr.bf16.mxu0 0
        %1103 = vmatpush1.bf16.xpose.msra.mxu0 0
        %1104 = vmatprep.subr.bf16.mxu0 0
        %1105 = vmatpush1.bf16.xpose.msra.mxu0 0
        %1106 = vmatprep.subr.bf16.mxu0 0
        %1107 = vmatpush1.bf16.xpose.msra.mxu0 0
        %1108 = vmatprep.subr.bf16.mxu0 0
        %1109 = vmatpush1.bf16.xpose.msra.mxu0 0
        %1110 = vmatprep.subr.bf16.mxu0 0
        %1111 = vmatpush1.bf16.xpose.msra.mxu0 0
        %1112 = vmatprep.subr.bf16.mxu0 0
        %1113 = vmatpush1.bf16.xpose.msra.mxu0 0
        %1114 = vmatprep.subr.bf16.mxu0 0
        %1115 = vmatpush1.bf16.xpose.msra.mxu0 0
        %1116 = vmatprep.mubr.bf16.mxu0 0
        %1117 = vmatmul.mubr.bf16.gmra.mrb[0].mxu0 %v1079
        %v1118 = vpop.f32.mrb[0].mxu0
        %v1119 = vadd.f32 0.0, %v1118
        %v1120 = vpop.f32.mrb[0].mxu0
        %v1121 = vpop.f32.mrb[0].mxu0
        %v1122 = vpop.f32.mrb[0].mxu0
        %1123 = vdwg.mxu0
        %v1125 = vsel %vm1077, %v774, 0
        %v1128 = vsel %vm1077, %v924, 0
        %1130 = vmatprep.subr.bf16.mxu0 0
        %1131 = vmatpush1.bf16.xpose.msra.mxu0 %v1128
        %1132 = vmatprep.subr.bf16.mxu0 0
        %1133 = vmatpush1.bf16.xpose.msra.mxu0 0
        %1134 = vmatprep.subr.bf16.mxu0 0
        %1135 = vmatpush1.bf16.xpose.msra.mxu0 0
        %1136 = vmatprep.subr.bf16.mxu0 0
        %1137 = vmatpush1.bf16.xpose.msra.mxu0 0
        %1138 = vmatprep.subr.bf16.mxu0 0
        %1139 = vmatpush1.bf16.xpose.msra.mxu0 0
        %1140 = vmatprep.subr.bf16.mxu0 0
        %1141 = vmatpush1.bf16.xpose.msra.mxu0 0
        %1142 = vmatprep.subr.bf16.mxu0 0
        %1143 = vmatpush1.bf16.xpose.msra.mxu0 0
        %1144 = vmatprep.subr.bf16.mxu0 0
        %1145 = vmatpush1.bf16.xpose.msra.mxu0 0
        %1146 = vmatprep.subr.bf16.mxu0 0
        %1147 = vmatpush1.bf16.xpose.msra.mxu0 0
        %1148 = vmatprep.subr.bf16.mxu0 0
        %1149 = vmatpush1.bf16.xpose.msra.mxu0 0
        %1150 = vmatprep.subr.bf16.mxu0 0
        %1151 = vmatpush1.bf16.xpose.msra.mxu0 0
        %1152 = vmatprep.subr.bf16.mxu0 0
        %1153 = vmatpush1.bf16.xpose.msra.mxu0 0
        %1154 = vmatprep.subr.bf16.mxu0 0
        %1155 = vmatpush1.bf16.xpose.msra.mxu0 0
        %1156 = vmatprep.subr.bf16.mxu0 0
        %1157 = vmatpush1.bf16.xpose.msra.mxu0 0
        %1158 = vmatprep.subr.bf16.mxu0 0
        %1159 = vmatpush1.bf16.xpose.msra.mxu0 0
        %1160 = vmatprep.subr.bf16.mxu0 0
        %1161 = vmatpush1.bf16.xpose.msra.mxu0 0
        %1162 = vmatprep.mubr.bf16.mxu0 0
        %1163 = vmatmul.mubr.bf16.gmra.mrb[0].mxu0 %v1125
        %v1164 = vpop.f32.mrb[0].mxu0
        %v1165 = vadd.f32 0.0, %v1164
        %v1166 = vpop.f32.mrb[0].mxu0
        %v1167 = vpop.f32.mrb[0].mxu0
        %v1168 = vpop.f32.mrb[0].mxu0
        %1169 = vdwg.mxu0
        %v1171 = vsel %vm1077, %v775, 0
        %v1174 = vsel %vm1077, %v925, 0
        %1176 = vmatprep.subr.bf16.mxu0 0
        %1177 = vmatpush1.bf16.xpose.msra.mxu0 %v1174
        %1178 = vmatprep.subr.bf16.mxu0 0
        %1179 = vmatpush1.bf16.xpose.msra.mxu0 0
        %1180 = vmatprep.subr.bf16.mxu0 0
        %1181 = vmatpush1.bf16.xpose.msra.mxu0 0
        %1182 = vmatprep.subr.bf16.mxu0 0
        %1183 = vmatpush1.bf16.xpose.msra.mxu0 0
        %1184 = vmatprep.subr.bf16.mxu0 0
        %1185 = vmatpush1.bf16.xpose.msra.mxu0 0
        %1186 = vmatprep.subr.bf16.mxu0 0
        %1187 = vmatpush1.bf16.xpose.msra.mxu0 0
        %1188 = vmatprep.subr.bf16.mxu0 0
        %1189 = vmatpush1.bf16.xpose.msra.mxu0 0
        %1190 = vmatprep.subr.bf16.mxu0 0
        %1191 = vmatpush1.bf16.xpose.msra.mxu0 0
        %1192 = vmatprep.subr.bf16.mxu0 0
        %1193 = vmatpush1.bf16.xpose.msra.mxu0 0
        %1194 = vmatprep.subr.bf16.mxu0 0
        %1195 = vmatpush1.bf16.xpose.msra.mxu0 0
        %1196 = vmatprep.subr.bf16.mxu0 0
        %1197 = vmatpush1.bf16.xpose.msra.mxu0 0
        %1198 = vmatprep.subr.bf16.mxu0 0
        %1199 = vmatpush1.bf16.xpose.msra.mxu0 0
        %1200 = vmatprep.subr.bf16.mxu0 0
        %1201 = vmatpush1.bf16.xpose.msra.mxu0 0
        %1202 = vmatprep.subr.bf16.mxu0 0
        %1203 = vmatpush1.bf16.xpose.msra.mxu0 0
        %1204 = vmatprep.subr.bf16.mxu0 0
        %1205 = vmatpush1.bf16.xpose.msra.mxu0 0
        %1206 = vmatprep.subr.bf16.mxu0 0
        %1207 = vmatpush1.bf16.xpose.msra.mxu0 0
        %1208 = vmatprep.mubr.bf16.mxu0 0
        %1209 = vmatmul.mubr.bf16.gmra.mrb[0].mxu0 %v1171
        %v1210 = vpop.f32.mrb[0].mxu0
        %v1211 = vadd.f32 0.0, %v1210
        %v1212 = vpop.f32.mrb[0].mxu0
        %v1213 = vpop.f32.mrb[0].mxu0
        %v1214 = vpop.f32.mrb[0].mxu0
        %1215 = vdwg.mxu0
        %v1217 = vsel %vm1077, %v776, 0
        %v1220 = vsel %vm1077, %v926, 0
        %1222 = vmatprep.subr.bf16.mxu0 0
        %1223 = vmatpush1.bf16.xpose.msra.mxu0 %v1220
        %1224 = vmatprep.subr.bf16.mxu0 0
        %1225 = vmatpush1.bf16.xpose.msra.mxu0 0
        %1226 = vmatprep.subr.bf16.mxu0 0
        %1227 = vmatpush1.bf16.xpose.msra.mxu0 0
        %1228 = vmatprep.subr.bf16.mxu0 0
        %1229 = vmatpush1.bf16.xpose.msra.mxu0 0
        %1230 = vmatprep.subr.bf16.mxu0 0
        %1231 = vmatpush1.bf16.xpose.msra.mxu0 0
        %1232 = vmatprep.subr.bf16.mxu0 0
        %1233 = vmatpush1.bf16.xpose.msra.mxu0 0
        %1234 = vmatprep.subr.bf16.mxu0 0
        %1235 = vmatpush1.bf16.xpose.msra.mxu0 0
        %1236 = vmatprep.subr.bf16.mxu0 0
        %1237 = vmatpush1.bf16.xpose.msra.mxu0 0
        %1238 = vmatprep.subr.bf16.mxu0 0
        %1239 = vmatpush1.bf16.xpose.msra.mxu0 0
        %1240 = vmatprep.subr.bf16.mxu0 0
        %1241 = vmatpush1.bf16.xpose.msra.mxu0 0
        %1242 = vmatprep.subr.bf16.mxu0 0
        %1243 = vmatpush1.bf16.xpose.msra.mxu0 0
        %1244 = vmatprep.subr.bf16.mxu0 0
        %1245 = vmatpush1.bf16.xpose.msra.mxu0 0
        %1246 = vmatprep.subr.bf16.mxu0 0
        %1247 = vmatpush1.bf16.xpose.msra.mxu0 0
        %1248 = vmatprep.subr.bf16.mxu0 0
        %1249 = vmatpush1.bf16.xpose.msra.mxu0 0
        %1250 = vmatprep.subr.bf16.mxu0 0
        %1251 = vmatpush1.bf16.xpose.msra.mxu0 0
        %1252 = vmatprep.subr.bf16.mxu0 0
        %1253 = vmatpush1.bf16.xpose.msra.mxu0 0
        %1254 = vmatprep.mubr.bf16.mxu0 0
        %1255 = vmatmul.mubr.bf16.gmra.mrb[0].mxu0 %v1217
        %v1256 = vpop.f32.mrb[0].mxu0
        %v1257 = vadd.f32 0.0, %v1256
        %v1258 = vpop.f32.mrb[0].mxu0
        %v1259 = vpop.f32.mrb[0].mxu0
        %v1260 = vpop.f32.mrb[0].mxu0
        %1261 = vdwg.mxu0
        %v1262 = vsel %vm1077, %v1119, -inf
        %1263 = vmax.xlane.f32.xlu0 %v1262
        %v1264 = vpop.xlane.xlu0 %1263
        %v1265 = vsel %vm1077, %v1165, -inf
        %1266 = vmax.xlane.f32.xlu0 %v1265
        %v1267 = vpop.xlane.xlu0 %1266
        %v1268 = vsel %vm1077, %v1211, -inf
        %1269 = vmax.xlane.f32.xlu0 %v1268
        %v1270 = vpop.xlane.xlu0 %1269
        %v1271 = vsel %vm1077, %v1257, -inf
        %1272 = vmax.xlane.f32.xlu0 %v1271
        %v1273 = vpop.xlane.xlu0 %1272
        %v1274 = vsub.f32 %v1119, %v1264
        %v1275 = vsub.f32 %v1165, %v1267
        %v1276 = vsub.f32 %v1211, %v1270
        %v1277 = vsub.f32 %v1257, %v1273
        %v1278 = vmul.f32 %v1274, 1.442695
        %v1279 = vpow.pop %v1278
        %v1280 = vmul.f32 %v1275, 1.442695
        %v1281 = vpow.pop %v1280
        %v1282 = vmul.f32 %v1276, 1.442695
        %v1283 = vpow.pop %v1282
        %v1284 = vmul.f32 %v1277, 1.442695
        %v1285 = vpow.pop %v1284
        %v1286 = vsel %vm1077, %v1279, 0.0
        %1287 = vadd.xlane.f32.xlu0 %v1286
        %v1288 = vpop.xlane.xlu0 %1287
        %v1289 = vsel %vm1077, %v1281, 0.0
        %1290 = vadd.xlane.f32.xlu0 %v1289
        %v1291 = vpop.xlane.xlu0 %1290
        %v1292 = vsel %vm1077, %v1283, 0.0
        %1293 = vadd.xlane.f32.xlu0 %v1292
        %v1294 = vpop.xlane.xlu0 %1293
        %v1295 = vsel %vm1077, %v1285, 0.0
        %1296 = vadd.xlane.f32.xlu0 %v1295
        %v1297 = vpop.xlane.xlu0 %1296
        %v1298 = vrcp.pop %v1288
        %v1299 = vrcp.pop %v1291
        %v1300 = vrcp.pop %v1294
        %v1301 = vrcp.pop %v1297
        %v1302 = vmul.f32 %v1279, %v1298
        %v1303 = vmul.f32 %v1281, %v1299
        %v1304 = vmul.f32 %v1283, %v1300
        %v1305 = vmul.f32 %v1285, %v1301
        %1306 = vst.msk [vmem:[%s429] sm:$0xff] %vm1077, %v1302
        %1307 = vst.msk [vmem:[%s429 + $0x8] sm:$0xff] %vm1077, %v1303
        %1308 = vst.msk [vmem:[%s429 + $0x10] sm:$0xff] %vm1077, %v1304
        %1309 = vst.msk [vmem:[%s429 + $0x18] sm:$0xff] %vm1077, %v1305
        %v1310 = vpack.c.bf16 %v1302, %v1302
        %v1311 = vpack.c.bf16 %v1303, %v1303
        %v1312 = vpack.c.bf16 %v1304, %v1304
        %v1313 = vpack.c.bf16 %v1305, %v1305
        %v1315 = vsel %vm1077, %v1310, 0
        %vm1317 = vcmask 1043456
        %v1319 = vsel %vm1317, %v1073, 0
        %1321 = vmatprep.subr.bf16.mxu0 0
        %1322 = vmatpush1.bf16.msra.mxu0 %v1319
        %1323 = vmatprep.subr.bf16.mxu0 0
        %1324 = vmatpush1.bf16.msra.mxu0 0
        %1325 = vmatprep.subr.bf16.mxu0 0
        %1326 = vmatpush1.bf16.msra.mxu0 0
        %1327 = vmatprep.subr.bf16.mxu0 0
        %1328 = vmatpush1.bf16.msra.mxu0 0
        %1329 = vmatprep.subr.bf16.mxu0 0
        %1330 = vmatpush1.bf16.msra.mxu0 0
        %1331 = vmatprep.subr.bf16.mxu0 0
        %1332 = vmatpush1.bf16.msra.mxu0 0
        %1333 = vmatprep.subr.bf16.mxu0 0
        %1334 = vmatpush1.bf16.msra.mxu0 0
        %1335 = vmatprep.subr.bf16.mxu0 0
        %1336 = vmatpush1.bf16.msra.mxu0 0
        %1337 = vmatprep.subr.bf16.mxu0 0
        %1338 = vmatpush1.bf16.msra.mxu0 0
        %1339 = vmatprep.subr.bf16.mxu0 0
        %1340 = vmatpush1.bf16.msra.mxu0 0
        %1341 = vmatprep.subr.bf16.mxu0 0
        %1342 = vmatpush1.bf16.msra.mxu0 0
        %1343 = vmatprep.subr.bf16.mxu0 0
        %1344 = vmatpush1.bf16.msra.mxu0 0
        %1345 = vmatprep.subr.bf16.mxu0 0
        %1346 = vmatpush1.bf16.msra.mxu0 0
        %1347 = vmatprep.subr.bf16.mxu0 0
        %1348 = vmatpush1.bf16.msra.mxu0 0
        %1349 = vmatprep.subr.bf16.mxu0 0
        %1350 = vmatpush1.bf16.msra.mxu0 0
        %1351 = vmatprep.subr.bf16.mxu0 0
        %1352 = vmatpush1.bf16.msra.mxu0 0
        %1353 = vmatprep.mubr.bf16.mxu0 0
        %1354 = vmatmul.mubr.bf16.gmra.mrb[0].mxu0 %v1315
        %v1355 = vpop.f32.mrb[0].mxu0
        %v1356 = vadd.f32 0.0, %v1355
        %v1357 = vpop.f32.mrb[0].mxu0
        %v1358 = vpop.f32.mrb[0].mxu0
        %v1359 = vpop.f32.mrb[0].mxu0
        %1360 = vdwg.mxu0
        %v1362 = vsel %vm1077, %v1311, 0
        %v1365 = vsel %vm1317, %v1074, 0
        %1367 = vmatprep.subr.bf16.mxu0 0
        %1368 = vmatpush1.bf16.msra.mxu0 %v1365
        %1369 = vmatprep.subr.bf16.mxu0 0
        %1370 = vmatpush1.bf16.msra.mxu0 0
        %1371 = vmatprep.subr.bf16.mxu0 0
        %1372 = vmatpush1.bf16.msra.mxu0 0
        %1373 = vmatprep.subr.bf16.mxu0 0
        %1374 = vmatpush1.bf16.msra.mxu0 0
        %1375 = vmatprep.subr.bf16.mxu0 0
        %1376 = vmatpush1.bf16.msra.mxu0 0
        %1377 = vmatprep.subr.bf16.mxu0 0
        %1378 = vmatpush1.bf16.msra.mxu0 0
        %1379 = vmatprep.subr.bf16.mxu0 0
        %1380 = vmatpush1.bf16.msra.mxu0 0
        %1381 = vmatprep.subr.bf16.mxu0 0
        %1382 = vmatpush1.bf16.msra.mxu0 0
        %1383 = vmatprep.subr.bf16.mxu0 0
        %1384 = vmatpush1.bf16.msra.mxu0 0
        %1385 = vmatprep.subr.bf16.mxu0 0
        %1386 = vmatpush1.bf16.msra.mxu0 0
        %1387 = vmatprep.subr.bf16.mxu0 0
        %1388 = vmatpush1.bf16.msra.mxu0 0
        %1389 = vmatprep.subr.bf16.mxu0 0
        %1390 = vmatpush1.bf16.msra.mxu0 0
        %1391 = vmatprep.subr.bf16.mxu0 0
        %1392 = vmatpush1.bf16.msra.mxu0 0
        %1393 = vmatprep.subr.bf16.mxu0 0
        %1394 = vmatpush1.bf16.msra.mxu0 0
        %1395 = vmatprep.subr.bf16.mxu0 0
        %1396 = vmatpush1.bf16.msra.mxu0 0
        %1397 = vmatprep.subr.bf16.mxu0 0
        %1398 = vmatpush1.bf16.msra.mxu0 0
        %1399 = vmatprep.mubr.bf16.mxu0 0
        %1400 = vmatmul.mubr.bf16.gmra.mrb[0].mxu0 %v1362
        %v1401 = vpop.f32.mrb[0].mxu0
        %v1402 = vadd.f32 0.0, %v1401
        %v1403 = vpop.f32.mrb[0].mxu0
        %v1404 = vpop.f32.mrb[0].mxu0
        %v1405 = vpop.f32.mrb[0].mxu0
        %1406 = vdwg.mxu0
        %v1408 = vsel %vm1077, %v1312, 0
        %v1411 = vsel %vm1317, %v1075, 0
        %1413 = vmatprep.subr.bf16.mxu0 0
        %1414 = vmatpush1.bf16.msra.mxu0 %v1411
        %1415 = vmatprep.subr.bf16.mxu0 0
        %1416 = vmatpush1.bf16.msra.mxu0 0
        %1417 = vmatprep.subr.bf16.mxu0 0
        %1418 = vmatpush1.bf16.msra.mxu0 0
        %1419 = vmatprep.subr.bf16.mxu0 0
        %1420 = vmatpush1.bf16.msra.mxu0 0
        %1421 = vmatprep.subr.bf16.mxu0 0
        %1422 = vmatpush1.bf16.msra.mxu0 0
        %1423 = vmatprep.subr.bf16.mxu0 0
        %1424 = vmatpush1.bf16.msra.mxu0 0
        %1425 = vmatprep.subr.bf16.mxu0 0
        %1426 = vmatpush1.bf16.msra.mxu0 0
        %1427 = vmatprep.subr.bf16.mxu0 0
        %1428 = vmatpush1.bf16.msra.mxu0 0
        %1429 = vmatprep.subr.bf16.mxu0 0
        %1430 = vmatpush1.bf16.msra.mxu0 0
        %1431 = vmatprep.subr.bf16.mxu0 0
        %1432 = vmatpush1.bf16.msra.mxu0 0
        %1433 = vmatprep.subr.bf16.mxu0 0
        %1434 = vmatpush1.bf16.msra.mxu0 0
        %1435 = vmatprep.subr.bf16.mxu0 0
        %1436 = vmatpush1.bf16.msra.mxu0 0
        %1437 = vmatprep.subr.bf16.mxu0 0
        %1438 = vmatpush1.bf16.msra.mxu0 0
        %1439 = vmatprep.subr.bf16.mxu0 0
        %1440 = vmatpush1.bf16.msra.mxu0 0
        %1441 = vmatprep.subr.bf16.mxu0 0
        %1442 = vmatpush1.bf16.msra.mxu0 0
        %1443 = vmatprep.subr.bf16.mxu0 0
        %1444 = vmatpush1.bf16.msra.mxu0 0
        %1445 = vmatprep.mubr.bf16.mxu0 0
        %1446 = vmatmul.mubr.bf16.gmra.mrb[0].mxu0 %v1408
        %v1447 = vpop.f32.mrb[0].mxu0
        %v1448 = vadd.f32 0.0, %v1447
        %v1449 = vpop.f32.mrb[0].mxu0
        %v1450 = vpop.f32.mrb[0].mxu0
        %v1451 = vpop.f32.mrb[0].mxu0
        %1452 = vdwg.mxu0
        %v1454 = vsel %vm1077, %v1313, 0
        %v1457 = vsel %vm1317, %v1076, 0
        %1459 = vmatprep.subr.bf16.mxu0 0
        %1460 = vmatpush1.bf16.msra.mxu0 %v1457
        %1461 = vmatprep.subr.bf16.mxu0 0
        %1462 = vmatpush1.bf16.msra.mxu0 0
        %1463 = vmatprep.subr.bf16.mxu0 0
        %1464 = vmatpush1.bf16.msra.mxu0 0
        %1465 = vmatprep.subr.bf16.mxu0 0
        %1466 = vmatpush1.bf16.msra.mxu0 0
        %1467 = vmatprep.subr.bf16.mxu0 0
        %1468 = vmatpush1.bf16.msra.mxu0 0
        %1469 = vmatprep.subr.bf16.mxu0 0
        %1470 = vmatpush1.bf16.msra.mxu0 0
        %1471 = vmatprep.subr.bf16.mxu0 0
        %1472 = vmatpush1.bf16.msra.mxu0 0
        %1473 = vmatprep.subr.bf16.mxu0 0
        %1474 = vmatpush1.bf16.msra.mxu0 0
        %1475 = vmatprep.subr.bf16.mxu0 0
        %1476 = vmatpush1.bf16.msra.mxu0 0
        %1477 = vmatprep.subr.bf16.mxu0 0
        %1478 = vmatpush1.bf16.msra.mxu0 0
        %1479 = vmatprep.subr.bf16.mxu0 0
        %1480 = vmatpush1.bf16.msra.mxu0 0
        %1481 = vmatprep.subr.bf16.mxu0 0
        %1482 = vmatpush1.bf16.msra.mxu0 0
        %1483 = vmatprep.subr.bf16.mxu0 0
        %1484 = vmatpush1.bf16.msra.mxu0 0
        %1485 = vmatprep.subr.bf16.mxu0 0
        %1486 = vmatpush1.bf16.msra.mxu0 0
        %1487 = vmatprep.subr.bf16.mxu0 0
        %1488 = vmatpush1.bf16.msra.mxu0 0
        %1489 = vmatprep.subr.bf16.mxu0 0
        %1490 = vmatpush1.bf16.msra.mxu0 0
        %1491 = vmatprep.mubr.bf16.mxu0 0
        %1492 = vmatmul.mubr.bf16.gmra.mrb[0].mxu0 %v1454
        %v1493 = vpop.f32.mrb[0].mxu0
        %v1494 = vadd.f32 0.0, %v1493
        %v1495 = vpop.f32.mrb[0].mxu0
        %v1496 = vpop.f32.mrb[0].mxu0
        %v1497 = vpop.f32.mrb[0].mxu0
        %1498 = vdwg.mxu0
        %v1499 = vcombine.low %v1356, %v1448
        %v1500 = vcombine.high %v1356, %v1448
        %v1502 = vunpack.c.l.s4 1983009808
        %v1503 = vunpack.c.0.s8 %v1502
        %v1504 = vlaneseq
        %v1505 = vshrl.u32 %v1504, 7
        %v1506 = vsub.s32 %v1503, %v1505
        %v1507 = vrot.slane %v1499, %v1506
        %v1509 = vunpack.c.l.s4 1983009808
        %v1510 = vunpack.c.0.s8 %v1509
        %v1511 = vlaneseq
        %v1512 = vshrl.u32 %v1511, 7
        %v1513 = vsub.s32 %v1510, %v1512
        %v1514 = vrot.slane %v1500, %v1513
        %v1515 = vcombine.low %v1402, %v1494
        %v1516 = vcombine.high %v1402, %v1494
        %v1518 = vunpack.c.l.s4 1983009808
        %v1519 = vunpack.c.0.s8 %v1518
        %v1520 = vlaneseq
        %v1521 = vshrl.u32 %v1520, 7
        %v1522 = vsub.s32 %v1519, %v1521
        %v1523 = vrot.slane %v1515, %v1522
        %v1525 = vunpack.c.l.s4 1983009808
        %v1526 = vunpack.c.0.s8 %v1525
        %v1527 = vlaneseq
        %v1528 = vshrl.u32 %v1527, 7
        %v1529 = vsub.s32 %v1526, %v1528
        %v1530 = vrot.slane %v1516, %v1529
        %v1531 = vcombine.low %v1507, %v1523
        %v1532 = vcombine.high %v1507, %v1523
        %v1534 = vunpack.c.l.s4 1934713408
        %v1535 = vunpack.c.0.s8 %v1534
        %v1536 = vlaneseq
        %v1537 = vshrl.u32 %v1536, 7
        %v1538 = vsub.s32 %v1535, %v1537
        %v1539 = vrot.slane %v1531, %v1538
        %v1541 = vunpack.c.l.s4 1934713408
        %v1542 = vunpack.c.0.s8 %v1541
        %v1543 = vlaneseq
        %v1544 = vshrl.u32 %v1543, 7
        %v1545 = vsub.s32 %v1542, %v1544
        %v1546 = vrot.slane %v1532, %v1545
        %v1547 = vcombine.low %v1514, %v1530
        %v1548 = vcombine.high %v1514, %v1530
        %v1550 = vunpack.c.l.s4 1934713408
        %v1551 = vunpack.c.0.s8 %v1550
        %v1552 = vlaneseq
        %v1553 = vshrl.u32 %v1552, 7
        %v1554 = vsub.s32 %v1551, %v1553
        %v1555 = vrot.slane %v1547, %v1554
        %v1557 = vunpack.c.l.s4 1934713408
        %v1558 = vunpack.c.0.s8 %v1557
        %v1559 = vlaneseq
        %v1560 = vshrl.u32 %v1559, 7
        %v1561 = vsub.s32 %v1558, %v1560
        %v1562 = vrot.slane %v1548, %v1561
        %v1563 = vcombine.high %v1539, 0.0
        %v1564 = vcombine.high %v1546, 0.0
        %v1565 = vcombine.high %v1555, 0.0
        %v1566 = vcombine.high %v1562, 0.0
        %v1567 = vcombine.low %v1539, %v1546
        %v1569 = vunpack.c.l.s4 1983009808
        %v1570 = vunpack.c.0.s8 %v1569
        %v1571 = vlaneseq
        %v1572 = vshrl.u32 %v1571, 7
        %v1573 = vsub.s32 %v1570, %v1572
        %v1574 = vrot.slane %v1567, %v1573
        %v1575 = vcombine.low %v1563, %v1564
        %v1577 = vunpack.c.l.s4 1983009808
        %v1578 = vunpack.c.0.s8 %v1577
        %v1579 = vlaneseq
        %v1580 = vshrl.u32 %v1579, 7
        %v1581 = vsub.s32 %v1578, %v1580
        %v1582 = vrot.slane %v1575, %v1581
        %v1583 = vcombine.low %v1555, %v1562
        %v1585 = vunpack.c.l.s4 1983009808
        %v1586 = vunpack.c.0.s8 %v1585
        %v1587 = vlaneseq
        %v1588 = vshrl.u32 %v1587, 7
        %v1589 = vsub.s32 %v1586, %v1588
        %v1590 = vrot.slane %v1583, %v1589
        %v1591 = vcombine.low %v1565, %v1566
        %v1593 = vunpack.c.l.s4 1983009808
        %v1594 = vunpack.c.0.s8 %v1593
        %v1595 = vlaneseq
        %v1596 = vshrl.u32 %v1595, 7
        %v1597 = vsub.s32 %v1594, %v1596
        %v1598 = vrot.slane %v1591, %v1597
        %v1599 = vcombine.low %v1574, %v1582
        %v1600 = vcombine.high %v1574, %v1582
        %v1602 = vunpack.c.l.s4 1934713408
        %v1603 = vunpack.c.0.s8 %v1602
        %v1604 = vlaneseq
        %v1605 = vshrl.u32 %v1604, 7
        %v1606 = vsub.s32 %v1603, %v1605
        %v1607 = vrot.slane %v1599, %v1606
        %v1609 = vunpack.c.l.s4 1934713408
        %v1610 = vunpack.c.0.s8 %v1609
        %v1611 = vlaneseq
        %v1612 = vshrl.u32 %v1611, 7
        %v1613 = vsub.s32 %v1610, %v1612
        %v1614 = vrot.slane %v1600, %v1613
        %v1615 = vcombine.low %v1590, %v1598
        %v1616 = vcombine.high %v1590, %v1598
        %v1618 = vunpack.c.l.s4 1934713408
        %v1619 = vunpack.c.0.s8 %v1618
        %v1620 = vlaneseq
        %v1621 = vshrl.u32 %v1620, 7
        %v1622 = vsub.s32 %v1619, %v1621
        %v1623 = vrot.slane %v1615, %v1622
        %v1625 = vunpack.c.l.s4 1934713408
        %v1626 = vunpack.c.0.s8 %v1625
        %v1627 = vlaneseq
        %v1628 = vshrl.u32 %v1627, 7
        %v1629 = vsub.s32 %v1626, %v1628
        %v1630 = vrot.slane %v1616, %v1629
        %v1631 = vcombine.low %v1607, %v1623
        %v1632 = vcombine.high %v1607, %v1623
        %v1633 = vcombine.low %v1614, %v1630
        %v1634 = vcombine.high %v1614, %v1630
        %1636 = vrot.lane.b32.xlu0 %v1632, 8
        %v1637 = vpop.permute.xlu0 %1636
        %1640 = vrot.lane.b32.xlu0 %v1633, 16
        %v1641 = vpop.permute.xlu0 %1640
        %1644 = vrot.lane.b32.xlu0 %v1634, 24
        %v1645 = vpop.permute.xlu0 %1644
        %v1647 = vsel %vm1077, %v1631, %v1637
        %vm1648 = vcmask 130048
        %v1649 = vsel %vm1648, %v1647, %v1641
        %vm1650 = vcmask 195584
        %v1651 = vsel %vm1650, %v1649, %v1645
        %v1652 = vpack.c.bf16 %v1651, %v1651
        %v1653 = vld [vmem:[#allocation8] sm:$0xf]
        %v1654 = vld [vmem:[#allocation8 + $0x4] sm:$0xf]
        %v1655 = vld [vmem:[#allocation8 + $0x8] sm:$0xf]
        %v1656 = vld [vmem:[#allocation8 + $0xc] sm:$0xf]
        %v1657 = vld [vmem:[%s8] sm:$0x1]
        %v1659 = vlaneseq
        %v1660 = vshrl.u32 %v1659, 7
        %v1661 = vsub.s32 0, %v1660
        %v1662 = vrot.slane %v1657, %v1661
        %v1668 = vunpack.c.l.b16 %v1653
        %v1669 = vunpack.c.l.b16 %v1654
        %v1670 = vunpack.c.l.b16 %v1655
        %v1671 = vunpack.c.l.b16 %v1656
        %v1672 = vpack.c.b16 %v1669, %v1668
        %v1673 = vpack.c.b16 %v1671, %v1670
        %v1677 = vsel %vm456, %v1652, 0
        %1679 = vmatprep.subr.bf16.mxu0 0
        %1680 = vmatpush1.bf16.msra.mxu0 %v1672
        %1681 = vmatprep.subr.bf16.mxu0 0
        %1682 = vmatpush1.bf16.msra.mxu0 %v1673
        %1683 = vmatprep.subr.bf16.mxu0 0
        %1684 = vmatpush1.bf16.msra.mxu0 0
        %1685 = vmatprep.subr.bf16.mxu0 0
        %1686 = vmatpush1.bf16.msra.mxu0 0
        %1687 = vmatprep.subr.bf16.mxu0 0
        %1688 = vmatpush1.bf16.msra.mxu0 0
        %1689 = vmatprep.subr.bf16.mxu0 0
        %1690 = vmatpush1.bf16.msra.mxu0 0
        %1691 = vmatprep.subr.bf16.mxu0 0
        %1692 = vmatpush1.bf16.msra.mxu0 0
        %1693 = vmatprep.subr.bf16.mxu0 0
        %1694 = vmatpush1.bf16.msra.mxu0 0
        %1695 = vmatprep.subr.bf16.mxu0 0
        %1696 = vmatpush1.bf16.msra.mxu0 0
        %1697 = vmatprep.subr.bf16.mxu0 0
        %1698 = vmatpush1.bf16.msra.mxu0 0
        %1699 = vmatprep.subr.bf16.mxu0 0
        %1700 = vmatpush1.bf16.msra.mxu0 0
        %1701 = vmatprep.subr.bf16.mxu0 0
        %1702 = vmatpush1.bf16.msra.mxu0 0
        %1703 = vmatprep.subr.bf16.mxu0 0
        %1704 = vmatpush1.bf16.msra.mxu0 0
        %1705 = vmatprep.subr.bf16.mxu0 0
        %1706 = vmatpush1.bf16.msra.mxu0 0
        %1707 = vmatprep.subr.bf16.mxu0 0
        %1708 = vmatpush1.bf16.msra.mxu0 0
        %1709 = vmatprep.subr.bf16.mxu0 0
        %1710 = vmatpush1.bf16.msra.mxu0 0
        %1711 = vmatprep.mubr.bf16.mxu0 0
        %1712 = vmatmul.mubr.bf16.gmra.mrb[0].mxu0 %v1677
        %v1713 = vpop.f32.mrb[0].mxu0
        %v1714 = vadd.f32 %v1662, %v1713
        %v1715 = vpop.f32.mrb[0].mxu0
        %v1716 = vpop.f32.mrb[0].mxu0
        %v1717 = vpop.f32.mrb[0].mxu0
        %1718 = vdwg.mxu0
        %1719 = vst.msk [vmem:[%s422] sm:$0xff] %vm456, %v1714
        %s1720 = sand.u32 %s235, 1
        %s1721 = scalar_lea.sflag [#allocation4], %s1720
        %s1722 = sand.u32 %s235, 1
        %s1723 = smul.addr %s1722, 8
        %s1724 = scalar_lea.vmem [#allocation10], %s1723
        %s1725 = sand.u32 %s261, 1
        %s1726 = scalar_lea.sflag [#allocation12], %s1725
        %s1727 = sand.u32 %s261, 1
        %s1728 = smul.addr %s1727, 32
        %s1729 = scalar_lea.vmem [#allocation11], %s1728
        // Predicated region
        $region73: #{tpu_custom_call.1} parent=55 // pred_check
          %p1730 = pneg %p245
        $region74: #{tpu_custom_call.1} parent=55 // pred_check_branch
          %1732 = sbr.rel (%p1730) target = $region76
        $region75: #{tpu_custom_call.1} parent=55 // pred_region
          %s1734 = ssub.s32 128, 128
          %1735 = vsyncadd %s1721, %s1734
          %s1736 = smul.addr %s33, 128
          %s1737 = scalar_lea.hbm %s9, %s1736
          %s1739 = sshll.u32 %s1724, 4
          %s1740 = int_to_ptr.vmem [resolvable:$true] %s1739
          %1742 = dma.vmem_to_hbm [thread:$0]  %s1740, 128, %s1737, %s1721
        $region76: #{tpu_custom_call.1} parent=55 // pred_fallthru
          _
        // Predicated region
        $region77: #{tpu_custom_call.1} parent=55 // pred_check
          %p1743 = pneg %p271
        $region78: #{tpu_custom_call.1} parent=55 // pred_check_branch
          %1745 = sbr.rel (%p1743) target = $region80
        $region79: #{tpu_custom_call.1} parent=55 // pred_region
          %s1747 = ssub.s32 512, 512
          %1748 = vsyncadd %s1726, %s1747
          %s1749 = smul.addr %s33, 4
          %s1750 = smul.addr %s1749, 128
          %s1751 = scalar_lea.hbm %s10, %s1750
          %s1752 = sshll.u32 %s1729, 4
          %s1753 = int_to_ptr.vmem [resolvable:$true] %s1752
          %1758 = dma.vmem_to_hbm [thread:$0]  %s1753, 512, %s1751, %s1726, 128, 128, 8
        $region80: #{tpu_custom_call.1} parent=55 // pred_fallthru
          _
      $region56: #{tpu_custom_call.1} parent=5 // pred_fallthru
        _
      %p1759 = scmp.le.s32.totalorder 2, %s28
      // Predicated region
      $region81: #{tpu_custom_call.1} parent=5 // pred_check
        %p1760 = pneg %p1759
      $region82: #{tpu_custom_call.1} parent=5 // pred_check_branch
        %1762 = sbr.rel (%p1760) target = $region84
      $region83: #{tpu_custom_call.1} parent=5 // pred_region
        %s1763 = ssub.s32 %s28, 2
        // Predicated region
        $region85: #{tpu_custom_call.1} parent=83 // pred_check
          %p1764 = pneg %p251
        $region86: #{tpu_custom_call.1} parent=83 // pred_check_branch
          %1766 = sbr.rel (%p1764) target = $region88
        $region87: #{tpu_custom_call.1} parent=83 // pred_region
          %s1767 = sand.u32 %s236, 1
          %s1768 = scalar_lea.sflag [#allocation4], %s1767
          %s1769 = sand.u32 %s236, 1
          %s1770 = smul.addr %s1769, 8
          %s1771 = scalar_lea.vmem [#allocation10], %s1770
          %1772 = dma.done %s1768, 128
        $region88: #{tpu_custom_call.1} parent=83 // pred_fallthru
          _
        // Predicated region
        $region89: #{tpu_custom_call.1} parent=83 // pred_check
          %p1773 = pneg %p277
        $region90: #{tpu_custom_call.1} parent=83 // pred_check_branch
          %1775 = sbr.rel (%p1773) target = $region92
        $region91: #{tpu_custom_call.1} parent=83 // pred_region
          %s1776 = sand.u32 %s262, 1
          %s1777 = scalar_lea.sflag [#allocation12], %s1776
          %s1778 = sand.u32 %s262, 1
          %s1779 = smul.addr %s1778, 32
          %s1780 = scalar_lea.vmem [#allocation11], %s1779
          %1781 = dma.done %s1777, 512
        $region92: #{tpu_custom_call.1} parent=83 // pred_fallthru
          _
      $region84: #{tpu_custom_call.1} parent=5 // pred_fallthru
        _
    $region6: #{tpu_custom_call.1} parent=1 // loop_footer
      %s32 = sadd.s32 1, %s28
    $region7: #{tpu_custom_call.1} parent=1 // loop_footer_branch
      %27 = sbr.rel target = $region3
    $region8: #{tpu_custom_call.1} parent=1 // loop_exit
      _
    %1782 = vsyncpa [#allocation3], 1
    %s1783 = scalar_lea.sflag [#allocation3], 1
    %1784 = vsyncpa %s1783, 1
    %1785 = vsyncpa [#allocation6], 1
    %1786 = vsyncpa [#allocation9], 1
    %1787 = vsyncpa [#allocation4], 1
    %s1788 = scalar_lea.sflag [#allocation4], 1
    %1789 = vsyncpa %s1788, 1
    %1790 = vsyncpa [#allocation12], 1
    %s1791 = scalar_lea.sflag [#allocation12], 1
    %1792 = vsyncpa %s1791, 1

</llo_original>
